<compile_context>
chip_gen: v7x
topology: tpu7x:2x2x1
jax: 0.10.0
libtpu: 0.0.40
codegen_flags: <defaults>
</compile_context>

<pallas_src>
import jax
import jax.numpy as jnp
from jax.experimental import pallas as pl
from jax.experimental.pallas import tpu as pltpu


# ----------------------------- fused kernel ---------------------------------

def _fused_simclr_kernel(x_ref, wcT_ref, bc_ref, w1_ref, b1_ref, w2_ref, b2_ref,
                         emb_ref, out_ref):
    """Fused synthetic encoder + projector MLP.

    x_ref  : (TB, Cin, HW)  NCHW images with H*W flattened onto the lane axis
    wcT_ref: (F, Cin)       1x1 conv weight, PyTorch (out_ch, in_ch) layout
    bc_ref : (F, 1)         conv bias (broadcast over lanes)
    w1_ref : (F, H1)        projector layer 1 weight (stored as W.T)
    b1_ref : (1, H1)
    w2_ref : (H1, P)        projector layer 2 weight (stored as W.T)
    b2_ref : (1, P)
    emb_ref: (TB, F)        encoder embedding (module output #1)
    out_ref: (TB, P)        projector output  (module output #2)
    """
    tb, cin, hw = x_ref.shape
    f_dim = wcT_ref.shape[0]

    x = x_ref[...]                       # (TB, Cin, HW), HW lane-dense
    wc = wcT_ref[...]                    # (F, Cin)
    bc = bc_ref[...]                     # (F, 1)

    # ---- encoder: 1x1 conv (VPU broadcast-FMA over Cin) -> ReLU --------------
    # One batched op over all TB images; no per-image loop / concatenate.
    z = None
    for c in range(cin):                 # static unroll, Cin is tiny (4)
        term = wc[:, c:c + 1][None, :, :] * x[:, c:c + 1, :]   # (TB, F, HW)
        z = term if z is None else z + term
    z = jnp.maximum(z + bc[None, :, :], 0.0)                    # (TB, F, HW)

    # ---- global average pool as a matmul against a pre-scaled ones vector ----
    # Keeps the HW reduction on the MXU path instead of an XLU cross-lane
    # reduce + extra scale.  (TB, F, HW) -> (TB*F, HW) is a layout-preserving
    # leading-dim merge; the final (TB*F, 1) -> (TB, F) relayout is 64 elems.
    pool = jnp.full((hw, 1), 1.0 / hw, dtype=jnp.float32)
    emb = jnp.dot(z.reshape(tb * f_dim, hw), pool,
                  preferred_element_type=jnp.float32).reshape(tb, f_dim)
    emb_ref[...] = emb.astype(emb_ref.dtype)

    # ---- projector: Linear(F, H1) -> ReLU -> Linear(H1, P) -------------------
    h = jnp.dot(emb, w1_ref[...], preferred_element_type=jnp.float32) + b1_ref[...]
    h = jnp.maximum(h, 0.0)
    out = jnp.dot(h, w2_ref[...], preferred_element_type=jnp.float32) + b2_ref[...]
    out_ref[...] = out.astype(out_ref.dtype)


# ------------------------------ wrapper --------------------------------------

def _tensorcores_per_chip():
    """2 TensorCores on v7x (and v4/v5p megacore); 1 on v5e/v6e."""
    try:
        kind = jax.devices()[0].device_kind.lower()
    except Exception:
        return 1
    if any(tag in kind for tag in ("v7", "7x", "v5p", "v4")):
        return 2
    return 1


def simclr_forward(x_nchw, params):
    """Returns (embedding, out) exactly like the PyTorch module's forward."""
    B, Cin, H, W = x_nchw.shape
    HW = H * W
    F = params["wc"].shape[0]
    H1 = params["w1"].shape[1]
    P = params["w2"].shape[1]

    # Chip-aware batch tile:
    #  * 2-TC chips (v7x / megacore): >=2 grid steps so the "parallel" axis can
    #    actually shard across cores.
    #  * single-TC chips (v5e/v6e): whole small batch in one step; extra grid
    #    steps are pure overhead (~0.35 us each) with no second core to feed.
    n_cores = _tensorcores_per_chip()
    if n_cores >= 2:
        tb = max(1, min(8, B // n_cores))
    else:
        tb = min(B, 8)
    while B % tb:            # ragged batches: shrink until tb divides B
        tb -= 1
    n_tiles = B // tb

    # Pure metadata reshape of the NCHW input (no transpose / HBM copy):
    # HW=H*W lands on the lane axis inside the kernel (lane-dense loads).
    x = x_nchw.reshape(B, Cin, HW)
    wcT = params["wc"]                       # (F, Cin), PyTorch conv layout
    bc = params["bc"].reshape(F, 1)
    b1 = params["b1"].reshape(1, H1)
    b2 = params["b2"].reshape(1, P)

    emb, out = pl.pallas_call(
        _fused_simclr_kernel,
        out_shape=(
            jax.ShapeDtypeStruct((B, F), jnp.float32),
            jax.ShapeDtypeStruct((B, P), jnp.float32),
        ),
        grid_spec=pltpu.PrefetchScalarGridSpec(
            num_scalar_prefetch=0,
            grid=(n_tiles,),
            in_specs=[
                pl.BlockSpec((tb, Cin, HW), lambda i: (i, 0, 0)),   # x
                pl.BlockSpec((F, Cin), lambda i: (0, 0)),           # wcT (resident)
                pl.BlockSpec((F, 1), lambda i: (0, 0)),             # bc
                pl.BlockSpec((F, H1), lambda i: (0, 0)),            # w1 (resident)
                pl.BlockSpec((1, H1), lambda i: (0, 0)),            # b1
                pl.BlockSpec((H1, P), lambda i: (0, 0)),            # w2 (resident)
                pl.BlockSpec((1, P), lambda i: (0, 0)),             # b2
            ],
            out_specs=[
                pl.BlockSpec((tb, F), lambda i: (i, 0)),            # embedding
                pl.BlockSpec((tb, P), lambda i: (i, 0)),            # projector out
            ],
        ),
        compiler_params=pltpu.CompilerParams(
            dimension_semantics=("parallel",),
        ),
    )(x, wcT, bc, params["w1"], b1, params["w2"], b2)
    return emb, out


# ------------------------------ main ------------------------------------------

if __name__ == "__main__":
    # Small, deterministic shapes consistent with the module.
    B, Cin, H, W = 2, 4, 16, 16        # input images (NCHW)
    n_features = 32                    # encoder output features
    hidden = 2048                      # fixed in the module's projector
    projection_size = 16

    key = jax.random.PRNGKey(0)
    kx, kwc, kbc, kw1, kb1, kw2, kb2 = jax.random.split(key, 7)

    x = jax.random.normal(kx, (B, Cin, H, W), dtype=jnp.float32)

    params = {
        # synthetic encoder: 1x1 conv, PyTorch (out_ch, in_ch) layout; fc = Identity
        "wc": jax.random.normal(kwc, (n_features, Cin), dtype=jnp.float32) * 0.1,
        "bc": jax.random.normal(kbc, (n_features,), dtype=jnp.float32) * 0.1,
        # projector weights stored as (in, out) == PyTorch W.T (numerically identical)
        "w1": jax.random.normal(kw1, (n_features, hidden), dtype=jnp.float32) * 0.05,
        "b1": jax.random.normal(kb1, (hidden,), dtype=jnp.float32) * 0.05,
        "w2": jax.random.normal(kw2, (hidden, projection_size), dtype=jnp.float32) * 0.02,
        "b2": jax.random.normal(kb2, (projection_size,), dtype=jnp.float32) * 0.02,
    }

    embedding, out = simclr_forward(x, params)
    embedding = jax.block_until_ready(embedding)
    out = jax.block_until_ready(out)

    # Pure-JAX reference check (same math as the fused kernel, f32).
    x_flat = x.reshape(B, Cin, H * W)
    z = jnp.einsum("fc,bcp->bfp", params["wc"], x_flat)
    z = jnp.maximum(z + params["bc"][None, :, None], 0.0)
    emb_ref = jnp.mean(z, axis=-1)
    h_ref = jnp.maximum(emb_ref @ params["w1"] + params["b1"], 0.0)
    out_ref = h_ref @ params["w2"] + params["b2"]

    assert embedding.shape == (B, n_features)
    assert out.shape == (B, projection_size)
    assert jnp.allclose(embedding, emb_ref, atol=1e-4, rtol=1e-4)
    assert jnp.allclose(out, out_ref, atol=1e-3, rtol=1e-3)

    print("KERNEL_OK")
</pallas_src>

<mosaic_0001>
module attributes {stable_mosaic.version = 11 : i64} {
  func.func @_fused_simclr_kernel(%arg0: i32, %arg1: memref<2x4x256xf32, #tpu.memory_space<vmem>>, %arg2: memref<32x4xf32, #tpu.memory_space<vmem>>, %arg3: memref<32x1xf32, #tpu.memory_space<vmem>>, %arg4: memref<32x2048xf32, #tpu.memory_space<vmem>>, %arg5: memref<1x2048xf32, #tpu.memory_space<vmem>>, %arg6: memref<2048x16xf32, #tpu.memory_space<vmem>>, %arg7: memref<1x16xf32, #tpu.memory_space<vmem>>, %arg8: memref<2x32xf32, #tpu.memory_space<vmem>>, %arg9: memref<2x16xf32, #tpu.memory_space<vmem>>) attributes {dimension_semantics = [#tpu.dimension_semantics<parallel>], iteration_bounds = array<i64: 1>, scalar_prefetch = 0 : i64, scratch_operands = 0 : i64, tpu.core_type = #tpu.core_type<tc>, window_params = [{transform_indices = @transform_0, window_bounds = array<i64: 2, 4, 256>}, {pipeline_mode = #tpu.pipeline_mode<synchronous>, transform_indices = @transform_1, window_bounds = array<i64: 32, 4>}, {pipeline_mode = #tpu.pipeline_mode<synchronous>, transform_indices = @transform_2, window_bounds = array<i64: 32, 1>}, {pipeline_mode = #tpu.pipeline_mode<synchronous>, transform_indices = @transform_3, window_bounds = array<i64: 32, 2048>}, {pipeline_mode = #tpu.pipeline_mode<synchronous>, transform_indices = @transform_4, window_bounds = array<i64: 1, 2048>}, {pipeline_mode = #tpu.pipeline_mode<synchronous>, transform_indices = @transform_5, window_bounds = array<i64: 2048, 16>}, {pipeline_mode = #tpu.pipeline_mode<synchronous>, transform_indices = @transform_6, window_bounds = array<i64: 1, 16>}, {transform_indices = @transform_7, window_bounds = array<i64: 2, 32>}, {transform_indices = @transform_8, window_bounds = array<i64: 2, 16>}]} {
    %c0 = arith.constant 0 : index
    %c0_0 = arith.constant 0 : index
    %c0_1 = arith.constant 0 : index
    %0 = vector.load %arg1[%c0, %c0_0, %c0_1] : memref<2x4x256xf32, #tpu.memory_space<vmem>>, vector<2x4x256xf32>
    %c0_2 = arith.constant 0 : index
    %c0_3 = arith.constant 0 : index
    %1 = vector.load %arg2[%c0_2, %c0_3] : memref<32x4xf32, #tpu.memory_space<vmem>>, vector<32x4xf32>
    %c0_4 = arith.constant 0 : index
    %c0_5 = arith.constant 0 : index
    %2 = vector.load %arg3[%c0_4, %c0_5] : memref<32x1xf32, #tpu.memory_space<vmem>>, vector<32x1xf32>
    %3 = vector.extract_strided_slice %1 {offsets = [0, 0], sizes = [32, 1], strides = [1, 1]} : vector<32x4xf32> to vector<32x1xf32>
    %4 = vector.shape_cast %3 : vector<32x1xf32> to vector<1x32x1xf32>
    %5 = vector.extract_strided_slice %0 {offsets = [0, 0, 0], sizes = [2, 1, 256], strides = [1, 1, 1]} : vector<2x4x256xf32> to vector<2x1x256xf32>
    %6 = vector.broadcast %4 : vector<1x32x1xf32> to vector<2x32x256xf32>
    %7 = vector.broadcast %5 : vector<2x1x256xf32> to vector<2x32x256xf32>
    %8 = arith.mulf %6, %7 : vector<2x32x256xf32>
    %9 = vector.extract_strided_slice %1 {offsets = [0, 1], sizes = [32, 1], strides = [1, 1]} : vector<32x4xf32> to vector<32x1xf32>
    %10 = vector.shape_cast %9 : vector<32x1xf32> to vector<1x32x1xf32>
    %11 = vector.extract_strided_slice %0 {offsets = [0, 1, 0], sizes = [2, 1, 256], strides = [1, 1, 1]} : vector<2x4x256xf32> to vector<2x1x256xf32>
    %12 = vector.broadcast %10 : vector<1x32x1xf32> to vector<2x32x256xf32>
    %13 = vector.broadcast %11 : vector<2x1x256xf32> to vector<2x32x256xf32>
    %14 = arith.mulf %12, %13 : vector<2x32x256xf32>
    %15 = arith.addf %8, %14 : vector<2x32x256xf32>
    %16 = vector.extract_strided_slice %1 {offsets = [0, 2], sizes = [32, 1], strides = [1, 1]} : vector<32x4xf32> to vector<32x1xf32>
    %17 = vector.shape_cast %16 : vector<32x1xf32> to vector<1x32x1xf32>
    %18 = vector.extract_strided_slice %0 {offsets = [0, 2, 0], sizes = [2, 1, 256], strides = [1, 1, 1]} : vector<2x4x256xf32> to vector<2x1x256xf32>
    %19 = vector.broadcast %17 : vector<1x32x1xf32> to vector<2x32x256xf32>
    %20 = vector.broadcast %18 : vector<2x1x256xf32> to vector<2x32x256xf32>
    %21 = arith.mulf %19, %20 : vector<2x32x256xf32>
    %22 = arith.addf %15, %21 : vector<2x32x256xf32>
    %23 = vector.extract_strided_slice %1 {offsets = [0, 3], sizes = [32, 1], strides = [1, 1]} : vector<32x4xf32> to vector<32x1xf32>
    %24 = vector.shape_cast %23 : vector<32x1xf32> to vector<1x32x1xf32>
    %25 = vector.extract_strided_slice %0 {offsets = [0, 3, 0], sizes = [2, 1, 256], strides = [1, 1, 1]} : vector<2x4x256xf32> to vector<2x1x256xf32>
    %26 = vector.broadcast %24 : vector<1x32x1xf32> to vector<2x32x256xf32>
    %27 = vector.broadcast %25 : vector<2x1x256xf32> to vector<2x32x256xf32>
    %28 = arith.mulf %26, %27 : vector<2x32x256xf32>
    %29 = arith.addf %22, %28 : vector<2x32x256xf32>
    %30 = vector.shape_cast %2 : vector<32x1xf32> to vector<1x32x1xf32>
    %31 = vector.broadcast %30 : vector<1x32x1xf32> to vector<2x32x256xf32>
    %32 = arith.addf %29, %31 : vector<2x32x256xf32>
    %cst = arith.constant 0.000000e+00 : f32
    %33 = vector.broadcast %cst : f32 to vector<2x32x256xf32>
    %34 = arith.maximumf %32, %33 : vector<2x32x256xf32>
    %cst_6 = arith.constant 3.906250e-03 : f32
    %35 = vector.broadcast %cst_6 : f32 to vector<256x1xf32>
    %36 = vector.shape_cast %34 : vector<2x32x256xf32> to vector<64x256xf32>
    %cst_7 = arith.constant dense<0.000000e+00> : vector<64x1xf32>
    %37 = tpu.matmul %36, %35, %cst_7 {dimension_numbers = #tpu.dot_dimension_numbers<[1], [0], [0], [1], [0, 0, 1, 1], [], []>} : vector<64x256xf32>, vector<256x1xf32>, vector<64x1xf32> -> vector<64x1xf32>
    %38 = vector.shape_cast %37 : vector<64x1xf32> to vector<2x32xf32>
    %c0_8 = arith.constant 0 : index
    %c0_9 = arith.constant 0 : index
    %39 = vector.load %arg8[%c0_8, %c0_9] : memref<2x32xf32, #tpu.memory_space<vmem>>, vector<2x32xf32>
    tpu.vector_store %arg8[%c0_8, %c0_9], %38 {strides = array<i32>} : memref<2x32xf32, #tpu.memory_space<vmem>>, vector<2x32xf32>,
    %c0_10 = arith.constant 0 : index
    %c0_11 = arith.constant 0 : index
    %40 = vector.load %arg4[%c0_10, %c0_11] : memref<32x2048xf32, #tpu.memory_space<vmem>>, vector<32x2048xf32>
    %cst_12 = arith.constant dense<0.000000e+00> : vector<2x2048xf32>
    %41 = tpu.matmul %38, %40, %cst_12 {dimension_numbers = #tpu.dot_dimension_numbers<[1], [0], [0], [1], [0, 0, 1, 1], [], []>} : vector<2x32xf32>, vector<32x2048xf32>, vector<2x2048xf32> -> vector<2x2048xf32>
    %c0_13 = arith.constant 0 : index
    %c0_14 = arith.constant 0 : index
    %42 = vector.load %arg5[%c0_13, %c0_14] : memref<1x2048xf32, #tpu.memory_space<vmem>>, vector<1x2048xf32>
    %43 = vector.broadcast %42 : vector<1x2048xf32> to vector<2x2048xf32>
    %44 = arith.addf %41, %43 : vector<2x2048xf32>
    %cst_15 = arith.constant 0.000000e+00 : f32
    %45 = vector.broadcast %cst_15 : f32 to vector<2x2048xf32>
    %46 = arith.maximumf %44, %45 : vector<2x2048xf32>
    %c0_16 = arith.constant 0 : index
    %c0_17 = arith.constant 0 : index
    %47 = vector.load %arg6[%c0_16, %c0_17] : memref<2048x16xf32, #tpu.memory_space<vmem>>, vector<2048x16xf32>
    %cst_18 = arith.constant dense<0.000000e+00> : vector<2x16xf32>
    %48 = tpu.matmul %46, %47, %cst_18 {dimension_numbers = #tpu.dot_dimension_numbers<[1], [0], [0], [1], [0, 0, 1, 1], [], []>} : vector<2x2048xf32>, vector<2048x16xf32>, vector<2x16xf32> -> vector<2x16xf32>
    %c0_19 = arith.constant 0 : index
    %c0_20 = arith.constant 0 : index
    %49 = vector.load %arg7[%c0_19, %c0_20] : memref<1x16xf32, #tpu.memory_space<vmem>>, vector<1x16xf32>
    %50 = vector.broadcast %49 : vector<1x16xf32> to vector<2x16xf32>
    %51 = arith.addf %48, %50 : vector<2x16xf32>
    %c0_21 = arith.constant 0 : index
    %c0_22 = arith.constant 0 : index
    %52 = vector.load %arg9[%c0_21, %c0_22] : memref<2x16xf32, #tpu.memory_space<vmem>>, vector<2x16xf32>
    tpu.vector_store %arg9[%c0_21, %c0_22], %51 {strides = array<i32>} : memref<2x16xf32, #tpu.memory_space<vmem>>, vector<2x16xf32>,
    return
  }
  func.func @transform_0(%arg0: i32) -> (i32, i32, i32) {
    %c0_i32 = arith.constant 0 : i32
    %c0_i32_0 = arith.constant 0 : i32
    %c0_i32_1 = arith.constant 0 : i32
    return %arg0, %c0_i32, %c0_i32_0 : i32, i32, i32
  }
  func.func @transform_1(%arg0: i32) -> (i32, i32) {
    %c0_i32 = arith.constant 0 : i32
    %c0_i32_0 = arith.constant 0 : i32
    %c0_i32_1 = arith.constant 0 : i32
    return %c0_i32, %c0_i32_0 : i32, i32
  }
  func.func @transform_2(%arg0: i32) -> (i32, i32) {
    %c0_i32 = arith.constant 0 : i32
    %c0_i32_0 = arith.constant 0 : i32
    %c0_i32_1 = arith.constant 0 : i32
    return %c0_i32, %c0_i32_0 : i32, i32
  }
  func.func @transform_3(%arg0: i32) -> (i32, i32) {
    %c0_i32 = arith.constant 0 : i32
    %c0_i32_0 = arith.constant 0 : i32
    %c0_i32_1 = arith.constant 0 : i32
    return %c0_i32, %c0_i32_0 : i32, i32
  }
  func.func @transform_4(%arg0: i32) -> (i32, i32) {
    %c0_i32 = arith.constant 0 : i32
    %c0_i32_0 = arith.constant 0 : i32
    %c0_i32_1 = arith.constant 0 : i32
    return %c0_i32, %c0_i32_0 : i32, i32
  }
  func.func @transform_5(%arg0: i32) -> (i32, i32) {
    %c0_i32 = arith.constant 0 : i32
    %c0_i32_0 = arith.constant 0 : i32
    %c0_i32_1 = arith.constant 0 : i32
    return %c0_i32, %c0_i32_0 : i32, i32
  }
  func.func @transform_6(%arg0: i32) -> (i32, i32) {
    %c0_i32 = arith.constant 0 : i32
    %c0_i32_0 = arith.constant 0 : i32
    %c0_i32_1 = arith.constant 0 : i32
    return %c0_i32, %c0_i32_0 : i32, i32
  }
  func.func @transform_7(%arg0: i32) -> (i32, i32) {
    %c0_i32 = arith.constant 0 : i32
    %c0_i32_0 = arith.constant 0 : i32
    return %arg0, %c0_i32 : i32, i32
  }
  func.func @transform_8(%arg0: i32) -> (i32, i32) {
    %c0_i32 = arith.constant 0 : i32
    %c0_i32_0 = arith.constant 0 : i32
    return %arg0, %c0_i32 : i32, i32
  }
}

</mosaic_0001>

<llo_original>
// kernel: tpu_custom_call.1
$region0: #{tpu_custom_call.1}
  #allocation0 [shape = 'u32[]', space=smem, size = 0x4, offset = 0x4, fixed_abs, tag = 'smem constant byte address 0x4 - core index']
  #allocation1 [shape = 'u32[144,128]{1,0:T(1,128)}', space=vmem, size = 0x12000, scoped, tag = 'internal scratch']
  %s0 = inlined_call_operand.vmem [shape: f32[2,4,256], index: 0, kind: input, shape index: {}]
  %s1 = inlined_call_operand.vmem [shape: f32[32,4], index: 1, kind: input, shape index: {}]
  %s2 = inlined_call_operand.vmem [shape: f32[32,1], index: 2, kind: input, shape index: {}]
  %s3 = inlined_call_operand.vmem [shape: f32[32,2048], index: 3, kind: input, shape index: {}]
  %s4 = inlined_call_operand.vmem [shape: f32[1,2048], index: 4, kind: input, shape index: {}]
  %s5 = inlined_call_operand.vmem [shape: f32[2048,16], index: 5, kind: input, shape index: {}]
  %s6 = inlined_call_operand.vmem [shape: f32[1,16], index: 6, kind: input, shape index: {}]
  %s7 = inlined_call_operand.hbm [shape: f32[2,32], index: 7, kind: output, shape index: {0}]
  %s8 = inlined_call_operand.hbm [shape: f32[2,16], index: 8, kind: output, shape index: {1}]
  %9 = xla_tuple %s7, %s8
  %s10 = sld [smem:[#allocation0]]
  $region46: #{tpu_custom_call.1} parent=0
    _
  %s12 = ssub.s32 1, %s10
  %s13 = scalar_select 0, %s12, %s10
  $region1: #{tpu_custom_call.1} parent=0
    #allocation2 [shape = 'u8[1024]{0}', space=vmem, size = 0x400, scoped, tag = 'output window, operand 0, single buffered']
    #allocation3 [shape = 's32[1]{0}', space=sflag, size = 0x4, scoped, tag = 'scoped memory for tpu_custom_call.1']
    #allocation4 [shape = 'u8[1024]{0}', space=vmem, size = 0x400, scoped, tag = 'output window, operand 1, single buffered']
    #allocation5 [shape = 's32[1]{0}', space=sflag, size = 0x4, scoped, tag = 'scoped memory for tpu_custom_call.1']
    %14 = vsyncpa [#allocation3], 0
    %15 = vsyncpa [#allocation5], 0
    // Predicated region
    $region2: #{tpu_custom_call.1} parent=1 // pred_check
      _
    $region3: #{tpu_custom_call.1} parent=1 // pred_check_branch
      %17 = sbr.rel (0) target = $region5
    $region4: #{tpu_custom_call.1} parent=1 // pred_region
      _
    $region5: #{tpu_custom_call.1} parent=1 // pred_fallthru
      _
    // Predicated region
    $region6: #{tpu_custom_call.1} parent=1 // pred_check
      _
    $region7: #{tpu_custom_call.1} parent=1 // pred_check_branch
      %19 = sbr.rel (0) target = $region9
    $region8: #{tpu_custom_call.1} parent=1 // pred_region
      _
    $region9: #{tpu_custom_call.1} parent=1 // pred_fallthru
      _
    // Predicated region
    $region10: #{tpu_custom_call.1} parent=1 // pred_check
      _
    $region11: #{tpu_custom_call.1} parent=1 // pred_check_branch
      %21 = sbr.rel (0) target = $region13
    $region12: #{tpu_custom_call.1} parent=1 // pred_region
      _
    $region13: #{tpu_custom_call.1} parent=1 // pred_fallthru
      _
    // Predicated region
    $region14: #{tpu_custom_call.1} parent=1 // pred_check
      _
    $region15: #{tpu_custom_call.1} parent=1 // pred_check_branch
      %23 = sbr.rel (0) target = $region17
    $region16: #{tpu_custom_call.1} parent=1 // pred_region
      _
    $region17: #{tpu_custom_call.1} parent=1 // pred_fallthru
      _
    // Predicated region
    $region18: #{tpu_custom_call.1} parent=1 // pred_check
      _
    $region19: #{tpu_custom_call.1} parent=1 // pred_check_branch
      %25 = sbr.rel (0) target = $region21
    $region20: #{tpu_custom_call.1} parent=1 // pred_region
      _
    $region21: #{tpu_custom_call.1} parent=1 // pred_fallthru
      _
    // Predicated region
    $region22: #{tpu_custom_call.1} parent=1 // pred_check
      _
    $region23: #{tpu_custom_call.1} parent=1 // pred_check_branch
      %27 = sbr.rel (0) target = $region25
    $region24: #{tpu_custom_call.1} parent=1 // pred_region
      _
    $region25: #{tpu_custom_call.1} parent=1 // pred_fallthru
      _
    // Predicated region
    $region26: #{tpu_custom_call.1} parent=1 // pred_check
      _
    $region27: #{tpu_custom_call.1} parent=1 // pred_check_branch
      %29 = sbr.rel (0) target = $region29
    $region28: #{tpu_custom_call.1} parent=1 // pred_region
      _
    $region29: #{tpu_custom_call.1} parent=1 // pred_fallthru
      _
    %v30 = vld [vmem:[%s0] sm:$0xff]
    %v31 = vld [vmem:[%s0 + $0x8] sm:$0xff]
    %v32 = vld [vmem:[%s1] sm:$0xff]
    %v33 = vld [vmem:[%s1 + $0x8] sm:$0xff]
    %v34 = vld [vmem:[%s1 + $0x10] sm:$0xff]
    %v35 = vld [vmem:[%s1 + $0x18] sm:$0xff]
    %v36 = vld [vmem:[%s2] sm:$0xff]
    %v37 = vld [vmem:[%s2 + $0x8] sm:$0xff]
    %v38 = vld [vmem:[%s2 + $0x10] sm:$0xff]
    %v39 = vld [vmem:[%s2 + $0x18] sm:$0xff]
    %41 = vset.pattern.permute.xlu0 0
    %42 = vperm.xlu0 %41, %v32
    %v43 = vpop.permute.xlu0 %42
    %46 = vset.pattern.permute.xlu0 0
    %47 = vperm.xlu0 %46, %v33
    %v48 = vpop.permute.xlu0 %47
    %51 = vset.pattern.permute.xlu0 0
    %52 = vperm.xlu0 %51, %v34
    %v53 = vpop.permute.xlu0 %52
    %56 = vset.pattern.permute.xlu0 0
    %57 = vperm.xlu0 %56, %v35
    %v58 = vpop.permute.xlu0 %57
    %v62 = vlaneseq
    %v63 = vshrl.u32 %v62, 7
    %v64 = vsub.s32 0, %v63
    %v65 = vrot.slane %v30, %v64
    %v66 = vlaneseq
    %v67 = vshrl.u32 %v66, 7
    %v68 = vsub.s32 4, %v67
    %v69 = vrot.slane %v30, %v68
    %v70 = vlaneseq
    %v71 = vshrl.u32 %v70, 7
    %v72 = vsub.s32 0, %v71
    %v73 = vrot.slane %v31, %v72
    %v74 = vlaneseq
    %v75 = vshrl.u32 %v74, 7
    %v76 = vsub.s32 4, %v75
    %v77 = vrot.slane %v31, %v76
    %v82 = vlaneseq
    %v83 = vshrl.u32 %v82, 7
    %v84 = vsub.s32 0, %v83
    %v85 = vrot.slane %v65, %v84
    %v86 = vlaneseq
    %v87 = vshrl.u32 %v86, 7
    %v88 = vsub.s32 0, %v87
    %v89 = vrot.slane %v69, %v88
    %v90 = vlaneseq
    %v91 = vshrl.u32 %v90, 7
    %v92 = vsub.s32 0, %v91
    %v93 = vrot.slane %v73, %v92
    %v94 = vlaneseq
    %v95 = vshrl.u32 %v94, 7
    %v96 = vsub.s32 0, %v95
    %v97 = vrot.slane %v77, %v96
    %v98 = vmul.f32 %v43, %v85
    %v99 = vmul.f32 %v43, %v89
    %v100 = vmul.f32 %v48, %v85
    %v101 = vmul.f32 %v48, %v89
    %v102 = vmul.f32 %v53, %v85
    %v103 = vmul.f32 %v53, %v89
    %v104 = vmul.f32 %v58, %v85
    %v105 = vmul.f32 %v58, %v89
    %v106 = vmul.f32 %v43, %v93
    %v107 = vmul.f32 %v43, %v97
    %v108 = vmul.f32 %v48, %v93
    %v109 = vmul.f32 %v48, %v97
    %v110 = vmul.f32 %v53, %v93
    %v111 = vmul.f32 %v53, %v97
    %v112 = vmul.f32 %v58, %v93
    %v113 = vmul.f32 %v58, %v97
    %114 = vset.pattern.permute.xlu0 1
    %115 = vperm.xlu0 %114, %v32
    %v116 = vpop.permute.xlu0 %115
    %118 = vset.pattern.permute.xlu0 1
    %119 = vperm.xlu0 %118, %v33
    %v120 = vpop.permute.xlu0 %119
    %122 = vset.pattern.permute.xlu0 1
    %123 = vperm.xlu0 %122, %v34
    %v124 = vpop.permute.xlu0 %123
    %126 = vset.pattern.permute.xlu0 1
    %127 = vperm.xlu0 %126, %v35
    %v128 = vpop.permute.xlu0 %127
    %v130 = vlaneseq
    %v131 = vshrl.u32 %v130, 7
    %v132 = vsub.s32 1, %v131
    %v133 = vrot.slane %v30, %v132
    %v134 = vlaneseq
    %v135 = vshrl.u32 %v134, 7
    %v136 = vsub.s32 5, %v135
    %v137 = vrot.slane %v30, %v136
    %v138 = vlaneseq
    %v139 = vshrl.u32 %v138, 7
    %v140 = vsub.s32 1, %v139
    %v141 = vrot.slane %v31, %v140
    %v142 = vlaneseq
    %v143 = vshrl.u32 %v142, 7
    %v144 = vsub.s32 5, %v143
    %v145 = vrot.slane %v31, %v144
    %v150 = vlaneseq
    %v151 = vshrl.u32 %v150, 7
    %v152 = vsub.s32 1, %v151
    %v153 = vrot.slane %v133, %v152
    %v154 = vlaneseq
    %v155 = vshrl.u32 %v154, 7
    %v156 = vsub.s32 1, %v155
    %v157 = vrot.slane %v137, %v156
    %v158 = vlaneseq
    %v159 = vshrl.u32 %v158, 7
    %v160 = vsub.s32 1, %v159
    %v161 = vrot.slane %v141, %v160
    %v162 = vlaneseq
    %v163 = vshrl.u32 %v162, 7
    %v164 = vsub.s32 1, %v163
    %v165 = vrot.slane %v145, %v164
    %v166 = vmul.f32 %v116, %v153
    %v167 = vmul.f32 %v116, %v157
    %v168 = vmul.f32 %v120, %v153
    %v169 = vmul.f32 %v120, %v157
    %v170 = vmul.f32 %v124, %v153
    %v171 = vmul.f32 %v124, %v157
    %v172 = vmul.f32 %v128, %v153
    %v173 = vmul.f32 %v128, %v157
    %v174 = vmul.f32 %v116, %v161
    %v175 = vmul.f32 %v116, %v165
    %v176 = vmul.f32 %v120, %v161
    %v177 = vmul.f32 %v120, %v165
    %v178 = vmul.f32 %v124, %v161
    %v179 = vmul.f32 %v124, %v165
    %v180 = vmul.f32 %v128, %v161
    %v181 = vmul.f32 %v128, %v165
    %v182 = vadd.f32 %v98, %v166
    %v183 = vadd.f32 %v99, %v167
    %v184 = vadd.f32 %v100, %v168
    %v185 = vadd.f32 %v101, %v169
    %v186 = vadd.f32 %v102, %v170
    %v187 = vadd.f32 %v103, %v171
    %v188 = vadd.f32 %v104, %v172
    %v189 = vadd.f32 %v105, %v173
    %v190 = vadd.f32 %v106, %v174
    %v191 = vadd.f32 %v107, %v175
    %v192 = vadd.f32 %v108, %v176
    %v193 = vadd.f32 %v109, %v177
    %v194 = vadd.f32 %v110, %v178
    %v195 = vadd.f32 %v111, %v179
    %v196 = vadd.f32 %v112, %v180
    %v197 = vadd.f32 %v113, %v181
    %198 = vset.pattern.permute.xlu0 2
    %199 = vperm.xlu0 %198, %v32
    %v200 = vpop.permute.xlu0 %199
    %202 = vset.pattern.permute.xlu0 2
    %203 = vperm.xlu0 %202, %v33
    %v204 = vpop.permute.xlu0 %203
    %206 = vset.pattern.permute.xlu0 2
    %207 = vperm.xlu0 %206, %v34
    %v208 = vpop.permute.xlu0 %207
    %210 = vset.pattern.permute.xlu0 2
    %211 = vperm.xlu0 %210, %v35
    %v212 = vpop.permute.xlu0 %211
    %v214 = vlaneseq
    %v215 = vshrl.u32 %v214, 7
    %v216 = vsub.s32 2, %v215
    %v217 = vrot.slane %v30, %v216
    %v218 = vlaneseq
    %v219 = vshrl.u32 %v218, 7
    %v220 = vsub.s32 6, %v219
    %v221 = vrot.slane %v30, %v220
    %v222 = vlaneseq
    %v223 = vshrl.u32 %v222, 7
    %v224 = vsub.s32 2, %v223
    %v225 = vrot.slane %v31, %v224
    %v226 = vlaneseq
    %v227 = vshrl.u32 %v226, 7
    %v228 = vsub.s32 6, %v227
    %v229 = vrot.slane %v31, %v228
    %v234 = vlaneseq
    %v235 = vshrl.u32 %v234, 7
    %v236 = vsub.s32 2, %v235
    %v237 = vrot.slane %v217, %v236
    %v238 = vlaneseq
    %v239 = vshrl.u32 %v238, 7
    %v240 = vsub.s32 2, %v239
    %v241 = vrot.slane %v221, %v240
    %v242 = vlaneseq
    %v243 = vshrl.u32 %v242, 7
    %v244 = vsub.s32 2, %v243
    %v245 = vrot.slane %v225, %v244
    %v246 = vlaneseq
    %v247 = vshrl.u32 %v246, 7
    %v248 = vsub.s32 2, %v247
    %v249 = vrot.slane %v229, %v248
    %v250 = vmul.f32 %v200, %v237
    %v251 = vmul.f32 %v200, %v241
    %v252 = vmul.f32 %v204, %v237
    %v253 = vmul.f32 %v204, %v241
    %v254 = vmul.f32 %v208, %v237
    %v255 = vmul.f32 %v208, %v241
    %v256 = vmul.f32 %v212, %v237
    %v257 = vmul.f32 %v212, %v241
    %v258 = vmul.f32 %v200, %v245
    %v259 = vmul.f32 %v200, %v249
    %v260 = vmul.f32 %v204, %v245
    %v261 = vmul.f32 %v204, %v249
    %v262 = vmul.f32 %v208, %v245
    %v263 = vmul.f32 %v208, %v249
    %v264 = vmul.f32 %v212, %v245
    %v265 = vmul.f32 %v212, %v249
    %v266 = vadd.f32 %v182, %v250
    %v267 = vadd.f32 %v183, %v251
    %v268 = vadd.f32 %v184, %v252
    %v269 = vadd.f32 %v185, %v253
    %v270 = vadd.f32 %v186, %v254
    %v271 = vadd.f32 %v187, %v255
    %v272 = vadd.f32 %v188, %v256
    %v273 = vadd.f32 %v189, %v257
    %v274 = vadd.f32 %v190, %v258
    %v275 = vadd.f32 %v191, %v259
    %v276 = vadd.f32 %v192, %v260
    %v277 = vadd.f32 %v193, %v261
    %v278 = vadd.f32 %v194, %v262
    %v279 = vadd.f32 %v195, %v263
    %v280 = vadd.f32 %v196, %v264
    %v281 = vadd.f32 %v197, %v265
    %282 = vset.pattern.permute.xlu0 3
    %283 = vperm.xlu0 %282, %v32
    %v284 = vpop.permute.xlu0 %283
    %286 = vset.pattern.permute.xlu0 3
    %287 = vperm.xlu0 %286, %v33
    %v288 = vpop.permute.xlu0 %287
    %290 = vset.pattern.permute.xlu0 3
    %291 = vperm.xlu0 %290, %v34
    %v292 = vpop.permute.xlu0 %291
    %294 = vset.pattern.permute.xlu0 3
    %295 = vperm.xlu0 %294, %v35
    %v296 = vpop.permute.xlu0 %295
    %v298 = vlaneseq
    %v299 = vshrl.u32 %v298, 7
    %v300 = vsub.s32 3, %v299
    %v301 = vrot.slane %v30, %v300
    %v302 = vlaneseq
    %v303 = vshrl.u32 %v302, 7
    %v304 = vsub.s32 7, %v303
    %v305 = vrot.slane %v30, %v304
    %v306 = vlaneseq
    %v307 = vshrl.u32 %v306, 7
    %v308 = vsub.s32 3, %v307
    %v309 = vrot.slane %v31, %v308
    %v310 = vlaneseq
    %v311 = vshrl.u32 %v310, 7
    %v312 = vsub.s32 7, %v311
    %v313 = vrot.slane %v31, %v312
    %v318 = vlaneseq
    %v319 = vshrl.u32 %v318, 7
    %v320 = vsub.s32 3, %v319
    %v321 = vrot.slane %v301, %v320
    %v322 = vlaneseq
    %v323 = vshrl.u32 %v322, 7
    %v324 = vsub.s32 3, %v323
    %v325 = vrot.slane %v305, %v324
    %v326 = vlaneseq
    %v327 = vshrl.u32 %v326, 7
    %v328 = vsub.s32 3, %v327
    %v329 = vrot.slane %v309, %v328
    %v330 = vlaneseq
    %v331 = vshrl.u32 %v330, 7
    %v332 = vsub.s32 3, %v331
    %v333 = vrot.slane %v313, %v332
    %v334 = vmul.f32 %v284, %v321
    %v335 = vmul.f32 %v284, %v325
    %v336 = vmul.f32 %v288, %v321
    %v337 = vmul.f32 %v288, %v325
    %v338 = vmul.f32 %v292, %v321
    %v339 = vmul.f32 %v292, %v325
    %v340 = vmul.f32 %v296, %v321
    %v341 = vmul.f32 %v296, %v325
    %v342 = vmul.f32 %v284, %v329
    %v343 = vmul.f32 %v284, %v333
    %v344 = vmul.f32 %v288, %v329
    %v345 = vmul.f32 %v288, %v333
    %v346 = vmul.f32 %v292, %v329
    %v347 = vmul.f32 %v292, %v333
    %v348 = vmul.f32 %v296, %v329
    %v349 = vmul.f32 %v296, %v333
    %v350 = vadd.f32 %v266, %v334
    %v351 = vadd.f32 %v267, %v335
    %v352 = vadd.f32 %v268, %v336
    %v353 = vadd.f32 %v269, %v337
    %v354 = vadd.f32 %v270, %v338
    %v355 = vadd.f32 %v271, %v339
    %v356 = vadd.f32 %v272, %v340
    %v357 = vadd.f32 %v273, %v341
    %v358 = vadd.f32 %v274, %v342
    %v359 = vadd.f32 %v275, %v343
    %v360 = vadd.f32 %v276, %v344
    %v361 = vadd.f32 %v277, %v345
    %v362 = vadd.f32 %v278, %v346
    %v363 = vadd.f32 %v279, %v347
    %v364 = vadd.f32 %v280, %v348
    %v365 = vadd.f32 %v281, %v349
    %367 = vset.pattern.permute.xlu0 0
    %368 = vperm.xlu0 %367, %v36
    %v369 = vpop.permute.xlu0 %368
    %372 = vset.pattern.permute.xlu0 0
    %373 = vperm.xlu0 %372, %v37
    %v374 = vpop.permute.xlu0 %373
    %377 = vset.pattern.permute.xlu0 0
    %378 = vperm.xlu0 %377, %v38
    %v379 = vpop.permute.xlu0 %378
    %382 = vset.pattern.permute.xlu0 0
    %383 = vperm.xlu0 %382, %v39
    %v384 = vpop.permute.xlu0 %383
    %v386 = vadd.f32 %v350, %v369
    %v387 = vadd.f32 %v351, %v369
    %v388 = vadd.f32 %v352, %v374
    %v389 = vadd.f32 %v353, %v374
    %v390 = vadd.f32 %v354, %v379
    %v391 = vadd.f32 %v355, %v379
    %v392 = vadd.f32 %v356, %v384
    %v393 = vadd.f32 %v357, %v384
    %v394 = vadd.f32 %v358, %v369
    %v395 = vadd.f32 %v359, %v369
    %v396 = vadd.f32 %v360, %v374
    %v397 = vadd.f32 %v361, %v374
    %v398 = vadd.f32 %v362, %v379
    %v399 = vadd.f32 %v363, %v379
    %v400 = vadd.f32 %v364, %v384
    %v401 = vadd.f32 %v365, %v384
    %v402 = vmax.f32 %v386, 0.0
    %v403 = vmax.f32 %v387, 0.0
    %v404 = vmax.f32 %v388, 0.0
    %v405 = vmax.f32 %v389, 0.0
    %v406 = vmax.f32 %v390, 0.0
    %v407 = vmax.f32 %v391, 0.0
    %v408 = vmax.f32 %v392, 0.0
    %v409 = vmax.f32 %v393, 0.0
    %v410 = vmax.f32 %v394, 0.0
    %v411 = vmax.f32 %v395, 0.0
    %v412 = vmax.f32 %v396, 0.0
    %v413 = vmax.f32 %v397, 0.0
    %v414 = vmax.f32 %v398, 0.0
    %v415 = vmax.f32 %v399, 0.0
    %v416 = vmax.f32 %v400, 0.0
    %v417 = vmax.f32 %v401, 0.0
    %418 = vmatprep.subr.mxu0 0.0
    %419 = vmatpush1.msra.mxu0 0.00390625
    %420 = vmatprep.subr.mxu0 0.0
    %421 = vmatpush1.msra.mxu0 0.00390625
    %422 = vmatprep.subr.mxu0 0.0
    %423 = vmatpush1.msra.mxu0 0.00390625
    %424 = vmatprep.subr.mxu0 0.0
    %425 = vmatpush1.msra.mxu0 0.00390625
    %426 = vmatprep.subr.mxu0 0.0
    %427 = vmatpush1.msra.mxu0 0.00390625
    %428 = vmatprep.subr.mxu0 0.0
    %429 = vmatpush1.msra.mxu0 0.00390625
    %430 = vmatprep.subr.mxu0 0.0
    %431 = vmatpush1.msra.mxu0 0.00390625
    %432 = vmatprep.subr.mxu0 0.0
    %433 = vmatpush1.msra.mxu0 0.00390625
    %434 = vmatprep.subr.mxu0 0.0
    %435 = vmatpush1.msra.mxu0 0.00390625
    %436 = vmatprep.subr.mxu0 0.0
    %437 = vmatpush1.msra.mxu0 0.00390625
    %438 = vmatprep.subr.mxu0 0.0
    %439 = vmatpush1.msra.mxu0 0.00390625
    %440 = vmatprep.subr.mxu0 0.0
    %441 = vmatpush1.msra.mxu0 0.00390625
    %442 = vmatprep.subr.mxu0 0.0
    %443 = vmatpush1.msra.mxu0 0.00390625
    %444 = vmatprep.subr.mxu0 0.0
    %445 = vmatpush1.msra.mxu0 0.00390625
    %446 = vmatprep.subr.mxu0 0.0
    %447 = vmatpush1.msra.mxu0 0.00390625
    %448 = vmatprep.subr.mxu0 0.0
    %449 = vmatpush1.msra.mxu0 0.00390625
    %450 = vmatprep.subr.mxu0 0.0
    %451 = vmatpush1.msra.mxu0 0.00390625
    %452 = vmatprep.subr.mxu0 0.0
    %453 = vmatpush1.msra.mxu0 0.00390625
    %454 = vmatprep.subr.mxu0 0.0
    %455 = vmatpush1.msra.mxu0 0.00390625
    %456 = vmatprep.subr.mxu0 0.0
    %457 = vmatpush1.msra.mxu0 0.00390625
    %458 = vmatprep.subr.mxu0 0.0
    %459 = vmatpush1.msra.mxu0 0.00390625
    %460 = vmatprep.subr.mxu0 0.0
    %461 = vmatpush1.msra.mxu0 0.00390625
    %462 = vmatprep.subr.mxu0 0.0
    %463 = vmatpush1.msra.mxu0 0.00390625
    %464 = vmatprep.subr.mxu0 0.0
    %465 = vmatpush1.msra.mxu0 0.00390625
    %466 = vmatprep.subr.mxu0 0.0
    %467 = vmatpush1.msra.mxu0 0.00390625
    %468 = vmatprep.subr.mxu0 0.0
    %469 = vmatpush1.msra.mxu0 0.00390625
    %470 = vmatprep.subr.mxu0 0.0
    %471 = vmatpush1.msra.mxu0 0.00390625
    %472 = vmatprep.subr.mxu0 0.0
    %473 = vmatpush1.msra.mxu0 0.00390625
    %474 = vmatprep.subr.mxu0 0.0
    %475 = vmatpush1.msra.mxu0 0.00390625
    %476 = vmatprep.subr.mxu0 0.0
    %477 = vmatpush1.msra.mxu0 0.00390625
    %478 = vmatprep.subr.mxu0 0.0
    %479 = vmatpush1.msra.mxu0 0.00390625
    %480 = vmatprep.subr.mxu0 0.0
    %481 = vmatpush1.msra.mxu0 0.00390625
    %482 = vmatprep.mubr.f32.mxu0 %v403
    %483 = vmatmul.mubr.f32.gmra.mrb[0].mxu0 %v402
    %v484 = vpop.f32.mrb[0].mxu0
    %v485 = vadd.f32 0.0, %v484
    %v486 = vpop.f32.mrb[0].mxu0
    %487 = vmatprep.mubr.f32.mxu0 %v405
    %488 = vmatmul.mubr.f32.gmra.mrb[0].mxu0 %v404
    %v489 = vpop.f32.mrb[0].mxu0
    %v490 = vadd.f32 0.0, %v489
    %v491 = vpop.f32.mrb[0].mxu0
    %492 = vmatprep.mubr.f32.mxu0 %v407
    %493 = vmatmul.mubr.f32.gmra.mrb[0].mxu0 %v406
    %v494 = vpop.f32.mrb[0].mxu0
    %v495 = vadd.f32 0.0, %v494
    %v496 = vpop.f32.mrb[0].mxu0
    %497 = vmatprep.mubr.f32.mxu0 %v409
    %498 = vmatmul.mubr.f32.gmra.mrb[0].mxu0 %v408
    %v499 = vpop.f32.mrb[0].mxu0
    %v500 = vadd.f32 0.0, %v499
    %v501 = vpop.f32.mrb[0].mxu0
    %502 = vmatprep.mubr.f32.mxu0 %v411
    %503 = vmatmul.mubr.f32.gmra.mrb[0].mxu0 %v410
    %v504 = vpop.f32.mrb[0].mxu0
    %v505 = vadd.f32 0.0, %v504
    %v506 = vpop.f32.mrb[0].mxu0
    %507 = vmatprep.mubr.f32.mxu0 %v413
    %508 = vmatmul.mubr.f32.gmra.mrb[0].mxu0 %v412
    %v509 = vpop.f32.mrb[0].mxu0
    %v510 = vadd.f32 0.0, %v509
    %v511 = vpop.f32.mrb[0].mxu0
    %512 = vmatprep.mubr.f32.mxu0 %v415
    %513 = vmatmul.mubr.f32.gmra.mrb[0].mxu0 %v414
    %v514 = vpop.f32.mrb[0].mxu0
    %v515 = vadd.f32 0.0, %v514
    %v516 = vpop.f32.mrb[0].mxu0
    %517 = vmatprep.mubr.f32.mxu0 %v417
    %518 = vmatmul.mubr.f32.gmra.mrb[0].mxu0 %v416
    %v519 = vpop.f32.mrb[0].mxu0
    %v520 = vadd.f32 0.0, %v519
    %v521 = vpop.f32.mrb[0].mxu0
    %522 = vdwg.mxu0
    %531 = vset.pattern.permute.xlu0 0
    %532 = vperm.xlu0 %531, %v485
    %v533 = vpop.permute.xlu0 %532
    %534 = vset.pattern.permute.xlu0 0
    %535 = vperm.xlu0 %534, %v490
    %v536 = vpop.permute.xlu0 %535
    %537 = vset.pattern.permute.xlu0 0
    %538 = vperm.xlu0 %537, %v495
    %v539 = vpop.permute.xlu0 %538
    %540 = vset.pattern.permute.xlu0 0
    %541 = vperm.xlu0 %540, %v500
    %v542 = vpop.permute.xlu0 %541
    %543 = vset.pattern.permute.xlu0 0
    %544 = vperm.xlu0 %543, %v505
    %v545 = vpop.permute.xlu0 %544
    %546 = vset.pattern.permute.xlu0 0
    %547 = vperm.xlu0 %546, %v510
    %v548 = vpop.permute.xlu0 %547
    %549 = vset.pattern.permute.xlu0 0
    %550 = vperm.xlu0 %549, %v515
    %v551 = vpop.permute.xlu0 %550
    %552 = vset.pattern.permute.xlu0 0
    %553 = vperm.xlu0 %552, %v520
    %v554 = vpop.permute.xlu0 %553
    %v555 = vlaneseq
    %v556 = vand.u32 %v555, 127
    %v557 = vlaneseq
    %v558 = vshrl.u32 %v557, 7
    %v559 = vsub.s32 %v556, %v558
    %v560 = vrot.slane %v533, %v559
    %v561 = vadd.s32 %v556, 4294967288
    %v562 = vlaneseq
    %v563 = vshrl.u32 %v562, 7
    %v564 = vsub.s32 %v561, %v563
    %v565 = vrot.slane %v536, %v564
    %vm566 = vcmask 130112
    %v567 = vsel %vm566, %v565, %v560
    %v568 = vadd.s32 %v556, 4294967280
    %v569 = vlaneseq
    %v570 = vshrl.u32 %v569, 7
    %v571 = vsub.s32 %v568, %v570
    %v572 = vrot.slane %v539, %v571
    %vm573 = vcmask 195712
    %v574 = vsel %vm573, %v572, %v567
    %v575 = vadd.s32 %v556, 4294967272
    %v576 = vlaneseq
    %v577 = vshrl.u32 %v576, 7
    %v578 = vsub.s32 %v575, %v577
    %v579 = vrot.slane %v542, %v578
    %vm580 = vcmask 261312
    %v581 = vsel %vm580, %v579, %v574
    %v582 = vlaneseq
    %v583 = vshrl.u32 %v582, 7
    %v584 = vsub.s32 %v556, %v583
    %v585 = vrot.slane %v545, %v584
    %v586 = vlaneseq
    %v587 = vshrl.u32 %v586, 7
    %v588 = vsub.s32 %v561, %v587
    %v589 = vrot.slane %v548, %v588
    %v590 = vsel %vm566, %v589, %v585
    %v591 = vlaneseq
    %v592 = vshrl.u32 %v591, 7
    %v593 = vsub.s32 %v568, %v592
    %v594 = vrot.slane %v551, %v593
    %v595 = vsel %vm573, %v594, %v590
    %v596 = vlaneseq
    %v597 = vshrl.u32 %v596, 7
    %v598 = vsub.s32 %v575, %v597
    %v599 = vrot.slane %v554, %v598
    %v600 = vsel %vm580, %v599, %v595
    %vm601 = vcmask 1041409
    %v602 = vsel %vm601, %v600, %v581
    %vm604 = vcmask 254976
    %605 = vst.msk [vmem:[#allocation2] sm:$0x3] %vm604, %v602
    %v606 = vld [vmem:[%s3] sm:$0xff]
    %v607 = vld [vmem:[%s3 + $0x8] sm:$0xff]
    %v608 = vld [vmem:[%s3 + $0x10] sm:$0xff]
    %v609 = vld [vmem:[%s3 + $0x18] sm:$0xff]
    %v610 = vld [vmem:[%s3 + $0x20] sm:$0xff]
    %v611 = vld [vmem:[%s3 + $0x28] sm:$0xff]
    %v612 = vld [vmem:[%s3 + $0x30] sm:$0xff]
    %v613 = vld [vmem:[%s3 + $0x38] sm:$0xff]
    %v614 = vld [vmem:[%s3 + $0x40] sm:$0xff]
    %v615 = vld [vmem:[%s3 + $0x48] sm:$0xff]
    %v616 = vld [vmem:[%s3 + $0x50] sm:$0xff]
    %v617 = vld [vmem:[%s3 + $0x58] sm:$0xff]
    %v618 = vld [vmem:[%s3 + $0x60] sm:$0xff]
    %v619 = vld [vmem:[%s3 + $0x68] sm:$0xff]
    %v620 = vld [vmem:[%s3 + $0x70] sm:$0xff]
    %v621 = vld [vmem:[%s3 + $0x78] sm:$0xff]
    %v622 = vld [vmem:[%s3 + $0x80] sm:$0xff]
    %v623 = vld [vmem:[%s3 + $0x88] sm:$0xff]
    %v624 = vld [vmem:[%s3 + $0x90] sm:$0xff]
    %v625 = vld [vmem:[%s3 + $0x98] sm:$0xff]
    %v626 = vld [vmem:[%s3 + $0xa0] sm:$0xff]
    %v627 = vld [vmem:[%s3 + $0xa8] sm:$0xff]
    %v628 = vld [vmem:[%s3 + $0xb0] sm:$0xff]
    %v629 = vld [vmem:[%s3 + $0xb8] sm:$0xff]
    %v630 = vld [vmem:[%s3 + $0xc0] sm:$0xff]
    %v631 = vld [vmem:[%s3 + $0xc8] sm:$0xff]
    %v632 = vld [vmem:[%s3 + $0xd0] sm:$0xff]
    %v633 = vld [vmem:[%s3 + $0xd8] sm:$0xff]
    %v634 = vld [vmem:[%s3 + $0xe0] sm:$0xff]
    %v635 = vld [vmem:[%s3 + $0xe8] sm:$0xff]
    %v636 = vld [vmem:[%s3 + $0xf0] sm:$0xff]
    %v637 = vld [vmem:[%s3 + $0xf8] sm:$0xff]
    %v638 = vld [vmem:[%s3 + $0x100] sm:$0xff]
    %v639 = vld [vmem:[%s3 + $0x108] sm:$0xff]
    %v640 = vld [vmem:[%s3 + $0x110] sm:$0xff]
    %v641 = vld [vmem:[%s3 + $0x118] sm:$0xff]
    %v642 = vld [vmem:[%s3 + $0x120] sm:$0xff]
    %v643 = vld [vmem:[%s3 + $0x128] sm:$0xff]
    %v644 = vld [vmem:[%s3 + $0x130] sm:$0xff]
    %v645 = vld [vmem:[%s3 + $0x138] sm:$0xff]
    %v646 = vld [vmem:[%s3 + $0x140] sm:$0xff]
    %v647 = vld [vmem:[%s3 + $0x148] sm:$0xff]
    %v648 = vld [vmem:[%s3 + $0x150] sm:$0xff]
    %v649 = vld [vmem:[%s3 + $0x158] sm:$0xff]
    %v650 = vld [vmem:[%s3 + $0x160] sm:$0xff]
    %v651 = vld [vmem:[%s3 + $0x168] sm:$0xff]
    %v652 = vld [vmem:[%s3 + $0x170] sm:$0xff]
    %v653 = vld [vmem:[%s3 + $0x178] sm:$0xff]
    %v654 = vld [vmem:[%s3 + $0x180] sm:$0xff]
    %v655 = vld [vmem:[%s3 + $0x188] sm:$0xff]
    %v656 = vld [vmem:[%s3 + $0x190] sm:$0xff]
    %v657 = vld [vmem:[%s3 + $0x198] sm:$0xff]
    %v658 = vld [vmem:[%s3 + $0x1a0] sm:$0xff]
    %v659 = vld [vmem:[%s3 + $0x1a8] sm:$0xff]
    %v660 = vld [vmem:[%s3 + $0x1b0] sm:$0xff]
    %v661 = vld [vmem:[%s3 + $0x1b8] sm:$0xff]
    %v662 = vld [vmem:[%s3 + $0x1c0] sm:$0xff]
    %v663 = vld [vmem:[%s3 + $0x1c8] sm:$0xff]
    %v664 = vld [vmem:[%s3 + $0x1d0] sm:$0xff]
    %v665 = vld [vmem:[%s3 + $0x1d8] sm:$0xff]
    %v666 = vld [vmem:[%s3 + $0x1e0] sm:$0xff]
    %v667 = vld [vmem:[%s3 + $0x1e8] sm:$0xff]
    %v668 = vld [vmem:[%s3 + $0x1f0] sm:$0xff]
    %v669 = vld [vmem:[%s3 + $0x1f8] sm:$0xff]
    %v670 = vld [vmem:[%s4] sm:$0xff]
    %v671 = vld [vmem:[%s4 + $0x8] sm:$0xff]
    %v674 = vlaneseq
    %v675 = vshrl.u32 %v674, 7
    %v676 = vsub.s32 0, %v675
    %v677 = vrot.slane %v670, %v676
    %v678 = vlaneseq
    %v679 = vshrl.u32 %v678, 7
    %v680 = vsub.s32 1, %v679
    %v681 = vrot.slane %v670, %v680
    %v682 = vlaneseq
    %v683 = vshrl.u32 %v682, 7
    %v684 = vsub.s32 2, %v683
    %v685 = vrot.slane %v670, %v684
    %v686 = vlaneseq
    %v687 = vshrl.u32 %v686, 7
    %v688 = vsub.s32 3, %v687
    %v689 = vrot.slane %v670, %v688
    %v690 = vlaneseq
    %v691 = vshrl.u32 %v690, 7
    %v692 = vsub.s32 4, %v691
    %v693 = vrot.slane %v670, %v692
    %v694 = vlaneseq
    %v695 = vshrl.u32 %v694, 7
    %v696 = vsub.s32 5, %v695
    %v697 = vrot.slane %v670, %v696
    %v698 = vlaneseq
    %v699 = vshrl.u32 %v698, 7
    %v700 = vsub.s32 6, %v699
    %v701 = vrot.slane %v670, %v700
    %v702 = vlaneseq
    %v703 = vshrl.u32 %v702, 7
    %v704 = vsub.s32 7, %v703
    %v705 = vrot.slane %v670, %v704
    %v706 = vlaneseq
    %v707 = vshrl.u32 %v706, 7
    %v708 = vsub.s32 0, %v707
    %v709 = vrot.slane %v671, %v708
    %v710 = vlaneseq
    %v711 = vshrl.u32 %v710, 7
    %v712 = vsub.s32 1, %v711
    %v713 = vrot.slane %v671, %v712
    %v714 = vlaneseq
    %v715 = vshrl.u32 %v714, 7
    %v716 = vsub.s32 2, %v715
    %v717 = vrot.slane %v671, %v716
    %v718 = vlaneseq
    %v719 = vshrl.u32 %v718, 7
    %v720 = vsub.s32 3, %v719
    %v721 = vrot.slane %v671, %v720
    %v722 = vlaneseq
    %v723 = vshrl.u32 %v722, 7
    %v724 = vsub.s32 4, %v723
    %v725 = vrot.slane %v671, %v724
    %v726 = vlaneseq
    %v727 = vshrl.u32 %v726, 7
    %v728 = vsub.s32 5, %v727
    %v729 = vrot.slane %v671, %v728
    %v730 = vlaneseq
    %v731 = vshrl.u32 %v730, 7
    %v732 = vsub.s32 6, %v731
    %v733 = vrot.slane %v671, %v732
    %v734 = vlaneseq
    %v735 = vshrl.u32 %v734, 7
    %v736 = vsub.s32 7, %v735
    %v737 = vrot.slane %v671, %v736
    %vm754 = vcmask 261120
    %v755 = vsel %vm754, %v602, 0
    %757 = vmatprep.subr.mxu0 %v607
    %758 = vmatpush1.msra.mxu0 %v606
    %759 = vmatprep.subr.mxu0 %v623
    %760 = vmatpush1.msra.mxu0 %v622
    %761 = vmatprep.subr.mxu0 %v639
    %762 = vmatpush1.msra.mxu0 %v638
    %763 = vmatprep.subr.mxu0 %v655
    %764 = vmatpush1.msra.mxu0 %v654
    %765 = vmatprep.subr.mxu0 0.0
    %766 = vmatpush1.msra.mxu0 0.0
    %767 = vmatprep.subr.mxu0 0.0
    %768 = vmatpush1.msra.mxu0 0.0
    %769 = vmatprep.subr.mxu0 0.0
    %770 = vmatpush1.msra.mxu0 0.0
    %771 = vmatprep.subr.mxu0 0.0
    %772 = vmatpush1.msra.mxu0 0.0
    %773 = vmatprep.subr.mxu0 0.0
    %774 = vmatpush1.msra.mxu0 0.0
    %775 = vmatprep.subr.mxu0 0.0
    %776 = vmatpush1.msra.mxu0 0.0
    %777 = vmatprep.subr.mxu0 0.0
    %778 = vmatpush1.msra.mxu0 0.0
    %779 = vmatprep.subr.mxu0 0.0
    %780 = vmatpush1.msra.mxu0 0.0
    %781 = vmatprep.subr.mxu0 0.0
    %782 = vmatpush1.msra.mxu0 0.0
    %783 = vmatprep.subr.mxu0 0.0
    %784 = vmatpush1.msra.mxu0 0.0
    %785 = vmatprep.subr.mxu0 0.0
    %786 = vmatpush1.msra.mxu0 0.0
    %787 = vmatprep.subr.mxu0 0.0
    %788 = vmatpush1.msra.mxu0 0.0
    %789 = vmatprep.subr.mxu0 0.0
    %790 = vmatpush1.msra.mxu0 0.0
    %791 = vmatprep.subr.mxu0 0.0
    %792 = vmatpush1.msra.mxu0 0.0
    %793 = vmatprep.subr.mxu0 0.0
    %794 = vmatpush1.msra.mxu0 0.0
    %795 = vmatprep.subr.mxu0 0.0
    %796 = vmatpush1.msra.mxu0 0.0
    %797 = vmatprep.subr.mxu0 0.0
    %798 = vmatpush1.msra.mxu0 0.0
    %799 = vmatprep.subr.mxu0 0.0
    %800 = vmatpush1.msra.mxu0 0.0
    %801 = vmatprep.subr.mxu0 0.0
    %802 = vmatpush1.msra.mxu0 0.0
    %803 = vmatprep.subr.mxu0 0.0
    %804 = vmatpush1.msra.mxu0 0.0
    %805 = vmatprep.subr.mxu0 0.0
    %806 = vmatpush1.msra.mxu0 0.0
    %807 = vmatprep.subr.mxu0 0.0
    %808 = vmatpush1.msra.mxu0 0.0
    %809 = vmatprep.subr.mxu0 0.0
    %810 = vmatpush1.msra.mxu0 0.0
    %811 = vmatprep.subr.mxu0 0.0
    %812 = vmatpush1.msra.mxu0 0.0
    %813 = vmatprep.subr.mxu0 0.0
    %814 = vmatpush1.msra.mxu0 0.0
    %815 = vmatprep.subr.mxu0 0.0
    %816 = vmatpush1.msra.mxu0 0.0
    %817 = vmatprep.subr.mxu0 0.0
    %818 = vmatpush1.msra.mxu0 0.0
    %819 = vmatprep.subr.mxu0 0.0
    %820 = vmatpush1.msra.mxu0 0.0
    %821 = vmatprep.mubr.f32.mxu0 0.0
    %822 = vmatmul.mubr.f32.gmra.mrb[0].mxu0 %v755
    %v823 = vpop.f32.mrb[0].mxu0
    %v824 = vadd.f32 %v677, %v823
    %v825 = vpop.f32.mrb[0].mxu0
    %v826 = vadd.f32 %v681, %v825
    %827 = vdwg.mxu0
    %828 = vmatprep.subr.mxu0 %v609
    %829 = vmatpush1.msra.mxu0 %v608
    %830 = vmatprep.subr.mxu0 %v625
    %831 = vmatpush1.msra.mxu0 %v624
    %832 = vmatprep.subr.mxu0 %v641
    %833 = vmatpush1.msra.mxu0 %v640
    %834 = vmatprep.subr.mxu0 %v657
    %835 = vmatpush1.msra.mxu0 %v656
    %836 = vmatprep.subr.mxu0 0.0
    %837 = vmatpush1.msra.mxu0 0.0
    %838 = vmatprep.subr.mxu0 0.0
    %839 = vmatpush1.msra.mxu0 0.0
    %840 = vmatprep.subr.mxu0 0.0
    %841 = vmatpush1.msra.mxu0 0.0
    %842 = vmatprep.subr.mxu0 0.0
    %843 = vmatpush1.msra.mxu0 0.0
    %844 = vmatprep.subr.mxu0 0.0
    %845 = vmatpush1.msra.mxu0 0.0
    %846 = vmatprep.subr.mxu0 0.0
    %847 = vmatpush1.msra.mxu0 0.0
    %848 = vmatprep.subr.mxu0 0.0
    %849 = vmatpush1.msra.mxu0 0.0
    %850 = vmatprep.subr.mxu0 0.0
    %851 = vmatpush1.msra.mxu0 0.0
    %852 = vmatprep.subr.mxu0 0.0
    %853 = vmatpush1.msra.mxu0 0.0
    %854 = vmatprep.subr.mxu0 0.0
    %855 = vmatpush1.msra.mxu0 0.0
    %856 = vmatprep.subr.mxu0 0.0
    %857 = vmatpush1.msra.mxu0 0.0
    %858 = vmatprep.subr.mxu0 0.0
    %859 = vmatpush1.msra.mxu0 0.0
    %860 = vmatprep.subr.mxu0 0.0
    %861 = vmatpush1.msra.mxu0 0.0
    %862 = vmatprep.subr.mxu0 0.0
    %863 = vmatpush1.msra.mxu0 0.0
    %864 = vmatprep.subr.mxu0 0.0
    %865 = vmatpush1.msra.mxu0 0.0
    %866 = vmatprep.subr.mxu0 0.0
    %867 = vmatpush1.msra.mxu0 0.0
    %868 = vmatprep.subr.mxu0 0.0
    %869 = vmatpush1.msra.mxu0 0.0
    %870 = vmatprep.subr.mxu0 0.0
    %871 = vmatpush1.msra.mxu0 0.0
    %872 = vmatprep.subr.mxu0 0.0
    %873 = vmatpush1.msra.mxu0 0.0
    %874 = vmatprep.subr.mxu0 0.0
    %875 = vmatpush1.msra.mxu0 0.0
    %876 = vmatprep.subr.mxu0 0.0
    %877 = vmatpush1.msra.mxu0 0.0
    %878 = vmatprep.subr.mxu0 0.0
    %879 = vmatpush1.msra.mxu0 0.0
    %880 = vmatprep.subr.mxu0 0.0
    %881 = vmatpush1.msra.mxu0 0.0
    %882 = vmatprep.subr.mxu0 0.0
    %883 = vmatpush1.msra.mxu0 0.0
    %884 = vmatprep.subr.mxu0 0.0
    %885 = vmatpush1.msra.mxu0 0.0
    %886 = vmatprep.subr.mxu0 0.0
    %887 = vmatpush1.msra.mxu0 0.0
    %888 = vmatprep.subr.mxu0 0.0
    %889 = vmatpush1.msra.mxu0 0.0
    %890 = vmatprep.subr.mxu0 0.0
    %891 = vmatpush1.msra.mxu0 0.0
    %892 = vmatprep.mubr.f32.mxu0 0.0
    %893 = vmatmul.mubr.f32.gmra.mrb[0].mxu0 %v755
    %v894 = vpop.f32.mrb[0].mxu0
    %v895 = vadd.f32 %v685, %v894
    %v896 = vpop.f32.mrb[0].mxu0
    %v897 = vadd.f32 %v689, %v896
    %898 = vdwg.mxu0
    %899 = vmatprep.subr.mxu0 %v611
    %900 = vmatpush1.msra.mxu0 %v610
    %901 = vmatprep.subr.mxu0 %v627
    %902 = vmatpush1.msra.mxu0 %v626
    %903 = vmatprep.subr.mxu0 %v643
    %904 = vmatpush1.msra.mxu0 %v642
    %905 = vmatprep.subr.mxu0 %v659
    %906 = vmatpush1.msra.mxu0 %v658
    %907 = vmatprep.subr.mxu0 0.0
    %908 = vmatpush1.msra.mxu0 0.0
    %909 = vmatprep.subr.mxu0 0.0
    %910 = vmatpush1.msra.mxu0 0.0
    %911 = vmatprep.subr.mxu0 0.0
    %912 = vmatpush1.msra.mxu0 0.0
    %913 = vmatprep.subr.mxu0 0.0
    %914 = vmatpush1.msra.mxu0 0.0
    %915 = vmatprep.subr.mxu0 0.0
    %916 = vmatpush1.msra.mxu0 0.0
    %917 = vmatprep.subr.mxu0 0.0
    %918 = vmatpush1.msra.mxu0 0.0
    %919 = vmatprep.subr.mxu0 0.0
    %920 = vmatpush1.msra.mxu0 0.0
    %921 = vmatprep.subr.mxu0 0.0
    %922 = vmatpush1.msra.mxu0 0.0
    %923 = vmatprep.subr.mxu0 0.0
    %924 = vmatpush1.msra.mxu0 0.0
    %925 = vmatprep.subr.mxu0 0.0
    %926 = vmatpush1.msra.mxu0 0.0
    %927 = vmatprep.subr.mxu0 0.0
    %928 = vmatpush1.msra.mxu0 0.0
    %929 = vmatprep.subr.mxu0 0.0
    %930 = vmatpush1.msra.mxu0 0.0
    %931 = vmatprep.subr.mxu0 0.0
    %932 = vmatpush1.msra.mxu0 0.0
    %933 = vmatprep.subr.mxu0 0.0
    %934 = vmatpush1.msra.mxu0 0.0
    %935 = vmatprep.subr.mxu0 0.0
    %936 = vmatpush1.msra.mxu0 0.0
    %937 = vmatprep.subr.mxu0 0.0
    %938 = vmatpush1.msra.mxu0 0.0
    %939 = vmatprep.subr.mxu0 0.0
    %940 = vmatpush1.msra.mxu0 0.0
    %941 = vmatprep.subr.mxu0 0.0
    %942 = vmatpush1.msra.mxu0 0.0
    %943 = vmatprep.subr.mxu0 0.0
    %944 = vmatpush1.msra.mxu0 0.0
    %945 = vmatprep.subr.mxu0 0.0
    %946 = vmatpush1.msra.mxu0 0.0
    %947 = vmatprep.subr.mxu0 0.0
    %948 = vmatpush1.msra.mxu0 0.0
    %949 = vmatprep.subr.mxu0 0.0
    %950 = vmatpush1.msra.mxu0 0.0
    %951 = vmatprep.subr.mxu0 0.0
    %952 = vmatpush1.msra.mxu0 0.0
    %953 = vmatprep.subr.mxu0 0.0
    %954 = vmatpush1.msra.mxu0 0.0
    %955 = vmatprep.subr.mxu0 0.0
    %956 = vmatpush1.msra.mxu0 0.0
    %957 = vmatprep.subr.mxu0 0.0
    %958 = vmatpush1.msra.mxu0 0.0
    %959 = vmatprep.subr.mxu0 0.0
    %960 = vmatpush1.msra.mxu0 0.0
    %961 = vmatprep.subr.mxu0 0.0
    %962 = vmatpush1.msra.mxu0 0.0
    %963 = vmatprep.mubr.f32.mxu0 0.0
    %964 = vmatmul.mubr.f32.gmra.mrb[0].mxu0 %v755
    %v965 = vpop.f32.mrb[0].mxu0
    %v966 = vadd.f32 %v693, %v965
    %v967 = vpop.f32.mrb[0].mxu0
    %v968 = vadd.f32 %v697, %v967
    %969 = vdwg.mxu0
    %970 = vmatprep.subr.mxu0 %v613
    %971 = vmatpush1.msra.mxu0 %v612
    %972 = vmatprep.subr.mxu0 %v629
    %973 = vmatpush1.msra.mxu0 %v628
    %974 = vmatprep.subr.mxu0 %v645
    %975 = vmatpush1.msra.mxu0 %v644
    %976 = vmatprep.subr.mxu0 %v661
    %977 = vmatpush1.msra.mxu0 %v660
    %978 = vmatprep.subr.mxu0 0.0
    %979 = vmatpush1.msra.mxu0 0.0
    %980 = vmatprep.subr.mxu0 0.0
    %981 = vmatpush1.msra.mxu0 0.0
    %982 = vmatprep.subr.mxu0 0.0
    %983 = vmatpush1.msra.mxu0 0.0
    %984 = vmatprep.subr.mxu0 0.0
    %985 = vmatpush1.msra.mxu0 0.0
    %986 = vmatprep.subr.mxu0 0.0
    %987 = vmatpush1.msra.mxu0 0.0
    %988 = vmatprep.subr.mxu0 0.0
    %989 = vmatpush1.msra.mxu0 0.0
    %990 = vmatprep.subr.mxu0 0.0
    %991 = vmatpush1.msra.mxu0 0.0
    %992 = vmatprep.subr.mxu0 0.0
    %993 = vmatpush1.msra.mxu0 0.0
    %994 = vmatprep.subr.mxu0 0.0
    %995 = vmatpush1.msra.mxu0 0.0
    %996 = vmatprep.subr.mxu0 0.0
    %997 = vmatpush1.msra.mxu0 0.0
    %998 = vmatprep.subr.mxu0 0.0
    %999 = vmatpush1.msra.mxu0 0.0
    %1000 = vmatprep.subr.mxu0 0.0
    %1001 = vmatpush1.msra.mxu0 0.0
    %1002 = vmatprep.subr.mxu0 0.0
    %1003 = vmatpush1.msra.mxu0 0.0
    %1004 = vmatprep.subr.mxu0 0.0
    %1005 = vmatpush1.msra.mxu0 0.0
    %1006 = vmatprep.subr.mxu0 0.0
    %1007 = vmatpush1.msra.mxu0 0.0
    %1008 = vmatprep.subr.mxu0 0.0
    %1009 = vmatpush1.msra.mxu0 0.0
    %1010 = vmatprep.subr.mxu0 0.0
    %1011 = vmatpush1.msra.mxu0 0.0
    %1012 = vmatprep.subr.mxu0 0.0
    %1013 = vmatpush1.msra.mxu0 0.0
    %1014 = vmatprep.subr.mxu0 0.0
    %1015 = vmatpush1.msra.mxu0 0.0
    %1016 = vmatprep.subr.mxu0 0.0
    %1017 = vmatpush1.msra.mxu0 0.0
    %1018 = vmatprep.subr.mxu0 0.0
    %1019 = vmatpush1.msra.mxu0 0.0
    %1020 = vmatprep.subr.mxu0 0.0
    %1021 = vmatpush1.msra.mxu0 0.0
    %1022 = vmatprep.subr.mxu0 0.0
    %1023 = vmatpush1.msra.mxu0 0.0
    %1024 = vmatprep.subr.mxu0 0.0
    %1025 = vmatpush1.msra.mxu0 0.0
    %1026 = vmatprep.subr.mxu0 0.0
    %1027 = vmatpush1.msra.mxu0 0.0
    %1028 = vmatprep.subr.mxu0 0.0
    %1029 = vmatpush1.msra.mxu0 0.0
    %1030 = vmatprep.subr.mxu0 0.0
    %1031 = vmatpush1.msra.mxu0 0.0
    %1032 = vmatprep.subr.mxu0 0.0
    %1033 = vmatpush1.msra.mxu0 0.0
    %1034 = vmatprep.mubr.f32.mxu0 0.0
    %1035 = vmatmul.mubr.f32.gmra.mrb[0].mxu0 %v755
    %v1036 = vpop.f32.mrb[0].mxu0
    %v1037 = vadd.f32 %v701, %v1036
    %v1038 = vpop.f32.mrb[0].mxu0
    %v1039 = vadd.f32 %v705, %v1038
    %1040 = vdwg.mxu0
    %1041 = vmatprep.subr.mxu0 %v615
    %1042 = vmatpush1.msra.mxu0 %v614
    %1043 = vmatprep.subr.mxu0 %v631
    %1044 = vmatpush1.msra.mxu0 %v630
    %1045 = vmatprep.subr.mxu0 %v647
    %1046 = vmatpush1.msra.mxu0 %v646
    %1047 = vmatprep.subr.mxu0 %v663
    %1048 = vmatpush1.msra.mxu0 %v662
    %1049 = vmatprep.subr.mxu0 0.0
    %1050 = vmatpush1.msra.mxu0 0.0
    %1051 = vmatprep.subr.mxu0 0.0
    %1052 = vmatpush1.msra.mxu0 0.0
    %1053 = vmatprep.subr.mxu0 0.0
    %1054 = vmatpush1.msra.mxu0 0.0
    %1055 = vmatprep.subr.mxu0 0.0
    %1056 = vmatpush1.msra.mxu0 0.0
    %1057 = vmatprep.subr.mxu0 0.0
    %1058 = vmatpush1.msra.mxu0 0.0
    %1059 = vmatprep.subr.mxu0 0.0
    %1060 = vmatpush1.msra.mxu0 0.0
    %1061 = vmatprep.subr.mxu0 0.0
    %1062 = vmatpush1.msra.mxu0 0.0
    %1063 = vmatprep.subr.mxu0 0.0
    %1064 = vmatpush1.msra.mxu0 0.0
    %1065 = vmatprep.subr.mxu0 0.0
    %1066 = vmatpush1.msra.mxu0 0.0
    %1067 = vmatprep.subr.mxu0 0.0
    %1068 = vmatpush1.msra.mxu0 0.0
    %1069 = vmatprep.subr.mxu0 0.0
    %1070 = vmatpush1.msra.mxu0 0.0
    %1071 = vmatprep.subr.mxu0 0.0
    %1072 = vmatpush1.msra.mxu0 0.0
    %1073 = vmatprep.subr.mxu0 0.0
    %1074 = vmatpush1.msra.mxu0 0.0
    %1075 = vmatprep.subr.mxu0 0.0
    %1076 = vmatpush1.msra.mxu0 0.0
    %1077 = vmatprep.subr.mxu0 0.0
    %1078 = vmatpush1.msra.mxu0 0.0
    %1079 = vmatprep.subr.mxu0 0.0
    %1080 = vmatpush1.msra.mxu0 0.0
    %1081 = vmatprep.subr.mxu0 0.0
    %1082 = vmatpush1.msra.mxu0 0.0
    %1083 = vmatprep.subr.mxu0 0.0
    %1084 = vmatpush1.msra.mxu0 0.0
    %1085 = vmatprep.subr.mxu0 0.0
    %1086 = vmatpush1.msra.mxu0 0.0
    %1087 = vmatprep.subr.mxu0 0.0
    %1088 = vmatpush1.msra.mxu0 0.0
    %1089 = vmatprep.subr.mxu0 0.0
    %1090 = vmatpush1.msra.mxu0 0.0
    %1091 = vmatprep.subr.mxu0 0.0
    %1092 = vmatpush1.msra.mxu0 0.0
    %1093 = vmatprep.subr.mxu0 0.0
    %1094 = vmatpush1.msra.mxu0 0.0
    %1095 = vmatprep.subr.mxu0 0.0
    %1096 = vmatpush1.msra.mxu0 0.0
    %1097 = vmatprep.subr.mxu0 0.0
    %1098 = vmatpush1.msra.mxu0 0.0
    %1099 = vmatprep.subr.mxu0 0.0
    %1100 = vmatpush1.msra.mxu0 0.0
    %1101 = vmatprep.subr.mxu0 0.0
    %1102 = vmatpush1.msra.mxu0 0.0
    %1103 = vmatprep.subr.mxu0 0.0
    %1104 = vmatpush1.msra.mxu0 0.0
    %1105 = vmatprep.mubr.f32.mxu0 0.0
    %1106 = vmatmul.mubr.f32.gmra.mrb[0].mxu0 %v755
    %v1107 = vpop.f32.mrb[0].mxu0
    %v1108 = vadd.f32 %v709, %v1107
    %v1109 = vpop.f32.mrb[0].mxu0
    %v1110 = vadd.f32 %v713, %v1109
    %1111 = vdwg.mxu0
    %1112 = vmatprep.subr.mxu0 %v617
    %1113 = vmatpush1.msra.mxu0 %v616
    %1114 = vmatprep.subr.mxu0 %v633
    %1115 = vmatpush1.msra.mxu0 %v632
    %1116 = vmatprep.subr.mxu0 %v649
    %1117 = vmatpush1.msra.mxu0 %v648
    %1118 = vmatprep.subr.mxu0 %v665
    %1119 = vmatpush1.msra.mxu0 %v664
    %1120 = vmatprep.subr.mxu0 0.0
    %1121 = vmatpush1.msra.mxu0 0.0
    %1122 = vmatprep.subr.mxu0 0.0
    %1123 = vmatpush1.msra.mxu0 0.0
    %1124 = vmatprep.subr.mxu0 0.0
    %1125 = vmatpush1.msra.mxu0 0.0
    %1126 = vmatprep.subr.mxu0 0.0
    %1127 = vmatpush1.msra.mxu0 0.0
    %1128 = vmatprep.subr.mxu0 0.0
    %1129 = vmatpush1.msra.mxu0 0.0
    %1130 = vmatprep.subr.mxu0 0.0
    %1131 = vmatpush1.msra.mxu0 0.0
    %1132 = vmatprep.subr.mxu0 0.0
    %1133 = vmatpush1.msra.mxu0 0.0
    %1134 = vmatprep.subr.mxu0 0.0
    %1135 = vmatpush1.msra.mxu0 0.0
    %1136 = vmatprep.subr.mxu0 0.0
    %1137 = vmatpush1.msra.mxu0 0.0
    %1138 = vmatprep.subr.mxu0 0.0
    %1139 = vmatpush1.msra.mxu0 0.0
    %1140 = vmatprep.subr.mxu0 0.0
    %1141 = vmatpush1.msra.mxu0 0.0
    %1142 = vmatprep.subr.mxu0 0.0
    %1143 = vmatpush1.msra.mxu0 0.0
    %1144 = vmatprep.subr.mxu0 0.0
    %1145 = vmatpush1.msra.mxu0 0.0
    %1146 = vmatprep.subr.mxu0 0.0
    %1147 = vmatpush1.msra.mxu0 0.0
    %1148 = vmatprep.subr.mxu0 0.0
    %1149 = vmatpush1.msra.mxu0 0.0
    %1150 = vmatprep.subr.mxu0 0.0
    %1151 = vmatpush1.msra.mxu0 0.0
    %1152 = vmatprep.subr.mxu0 0.0
    %1153 = vmatpush1.msra.mxu0 0.0
    %1154 = vmatprep.subr.mxu0 0.0
    %1155 = vmatpush1.msra.mxu0 0.0
    %1156 = vmatprep.subr.mxu0 0.0
    %1157 = vmatpush1.msra.mxu0 0.0
    %1158 = vmatprep.subr.mxu0 0.0
    %1159 = vmatpush1.msra.mxu0 0.0
    %1160 = vmatprep.subr.mxu0 0.0
    %1161 = vmatpush1.msra.mxu0 0.0
    %1162 = vmatprep.subr.mxu0 0.0
    %1163 = vmatpush1.msra.mxu0 0.0
    %1164 = vmatprep.subr.mxu0 0.0
    %1165 = vmatpush1.msra.mxu0 0.0
    %1166 = vmatprep.subr.mxu0 0.0
    %1167 = vmatpush1.msra.mxu0 0.0
    %1168 = vmatprep.subr.mxu0 0.0
    %1169 = vmatpush1.msra.mxu0 0.0
    %1170 = vmatprep.subr.mxu0 0.0
    %1171 = vmatpush1.msra.mxu0 0.0
    %1172 = vmatprep.subr.mxu0 0.0
    %1173 = vmatpush1.msra.mxu0 0.0
    %1174 = vmatprep.subr.mxu0 0.0
    %1175 = vmatpush1.msra.mxu0 0.0
    %1176 = vmatprep.mubr.f32.mxu0 0.0
    %1177 = vmatmul.mubr.f32.gmra.mrb[0].mxu0 %v755
    %v1178 = vpop.f32.mrb[0].mxu0
    %v1179 = vadd.f32 %v717, %v1178
    %v1180 = vpop.f32.mrb[0].mxu0
    %v1181 = vadd.f32 %v721, %v1180
    %1182 = vdwg.mxu0
    %1183 = vmatprep.subr.mxu0 %v619
    %1184 = vmatpush1.msra.mxu0 %v618
    %1185 = vmatprep.subr.mxu0 %v635
    %1186 = vmatpush1.msra.mxu0 %v634
    %1187 = vmatprep.subr.mxu0 %v651
    %1188 = vmatpush1.msra.mxu0 %v650
    %1189 = vmatprep.subr.mxu0 %v667
    %1190 = vmatpush1.msra.mxu0 %v666
    %1191 = vmatprep.subr.mxu0 0.0
    %1192 = vmatpush1.msra.mxu0 0.0
    %1193 = vmatprep.subr.mxu0 0.0
    %1194 = vmatpush1.msra.mxu0 0.0
    %1195 = vmatprep.subr.mxu0 0.0
    %1196 = vmatpush1.msra.mxu0 0.0
    %1197 = vmatprep.subr.mxu0 0.0
    %1198 = vmatpush1.msra.mxu0 0.0
    %1199 = vmatprep.subr.mxu0 0.0
    %1200 = vmatpush1.msra.mxu0 0.0
    %1201 = vmatprep.subr.mxu0 0.0
    %1202 = vmatpush1.msra.mxu0 0.0
    %1203 = vmatprep.subr.mxu0 0.0
    %1204 = vmatpush1.msra.mxu0 0.0
    %1205 = vmatprep.subr.mxu0 0.0
    %1206 = vmatpush1.msra.mxu0 0.0
    %1207 = vmatprep.subr.mxu0 0.0
    %1208 = vmatpush1.msra.mxu0 0.0
    %1209 = vmatprep.subr.mxu0 0.0
    %1210 = vmatpush1.msra.mxu0 0.0
    %1211 = vmatprep.subr.mxu0 0.0
    %1212 = vmatpush1.msra.mxu0 0.0
    %1213 = vmatprep.subr.mxu0 0.0
    %1214 = vmatpush1.msra.mxu0 0.0
    %1215 = vmatprep.subr.mxu0 0.0
    %1216 = vmatpush1.msra.mxu0 0.0
    %1217 = vmatprep.subr.mxu0 0.0
    %1218 = vmatpush1.msra.mxu0 0.0
    %1219 = vmatprep.subr.mxu0 0.0
    %1220 = vmatpush1.msra.mxu0 0.0
    %1221 = vmatprep.subr.mxu0 0.0
    %1222 = vmatpush1.msra.mxu0 0.0
    %1223 = vmatprep.subr.mxu0 0.0
    %1224 = vmatpush1.msra.mxu0 0.0
    %1225 = vmatprep.subr.mxu0 0.0
    %1226 = vmatpush1.msra.mxu0 0.0
    %1227 = vmatprep.subr.mxu0 0.0
    %1228 = vmatpush1.msra.mxu0 0.0
    %1229 = vmatprep.subr.mxu0 0.0
    %1230 = vmatpush1.msra.mxu0 0.0
    %1231 = vmatprep.subr.mxu0 0.0
    %1232 = vmatpush1.msra.mxu0 0.0
    %1233 = vmatprep.subr.mxu0 0.0
    %1234 = vmatpush1.msra.mxu0 0.0
    %1235 = vmatprep.subr.mxu0 0.0
    %1236 = vmatpush1.msra.mxu0 0.0
    %1237 = vmatprep.subr.mxu0 0.0
    %1238 = vmatpush1.msra.mxu0 0.0
    %1239 = vmatprep.subr.mxu0 0.0
    %1240 = vmatpush1.msra.mxu0 0.0
    %1241 = vmatprep.subr.mxu0 0.0
    %1242 = vmatpush1.msra.mxu0 0.0
    %1243 = vmatprep.subr.mxu0 0.0
    %1244 = vmatpush1.msra.mxu0 0.0
    %1245 = vmatprep.subr.mxu0 0.0
    %1246 = vmatpush1.msra.mxu0 0.0
    %1247 = vmatprep.mubr.f32.mxu0 0.0
    %1248 = vmatmul.mubr.f32.gmra.mrb[0].mxu0 %v755
    %v1249 = vpop.f32.mrb[0].mxu0
    %v1250 = vadd.f32 %v725, %v1249
    %v1251 = vpop.f32.mrb[0].mxu0
    %v1252 = vadd.f32 %v729, %v1251
    %1253 = vdwg.mxu0
    %1254 = vmatprep.subr.mxu0 %v621
    %1255 = vmatpush1.msra.mxu0 %v620
    %1256 = vmatprep.subr.mxu0 %v637
    %1257 = vmatpush1.msra.mxu0 %v636
    %1258 = vmatprep.subr.mxu0 %v653
    %1259 = vmatpush1.msra.mxu0 %v652
    %1260 = vmatprep.subr.mxu0 %v669
    %1261 = vmatpush1.msra.mxu0 %v668
    %1262 = vmatprep.subr.mxu0 0.0
    %1263 = vmatpush1.msra.mxu0 0.0
    %1264 = vmatprep.subr.mxu0 0.0
    %1265 = vmatpush1.msra.mxu0 0.0
    %1266 = vmatprep.subr.mxu0 0.0
    %1267 = vmatpush1.msra.mxu0 0.0
    %1268 = vmatprep.subr.mxu0 0.0
    %1269 = vmatpush1.msra.mxu0 0.0
    %1270 = vmatprep.subr.mxu0 0.0
    %1271 = vmatpush1.msra.mxu0 0.0
    %1272 = vmatprep.subr.mxu0 0.0
    %1273 = vmatpush1.msra.mxu0 0.0
    %1274 = vmatprep.subr.mxu0 0.0
    %1275 = vmatpush1.msra.mxu0 0.0
    %1276 = vmatprep.subr.mxu0 0.0
    %1277 = vmatpush1.msra.mxu0 0.0
    %1278 = vmatprep.subr.mxu0 0.0
    %1279 = vmatpush1.msra.mxu0 0.0
    %1280 = vmatprep.subr.mxu0 0.0
    %1281 = vmatpush1.msra.mxu0 0.0
    %1282 = vmatprep.subr.mxu0 0.0
    %1283 = vmatpush1.msra.mxu0 0.0
    %1284 = vmatprep.subr.mxu0 0.0
    %1285 = vmatpush1.msra.mxu0 0.0
    %1286 = vmatprep.subr.mxu0 0.0
    %1287 = vmatpush1.msra.mxu0 0.0
    %1288 = vmatprep.subr.mxu0 0.0
    %1289 = vmatpush1.msra.mxu0 0.0
    %1290 = vmatprep.subr.mxu0 0.0
    %1291 = vmatpush1.msra.mxu0 0.0
    %1292 = vmatprep.subr.mxu0 0.0
    %1293 = vmatpush1.msra.mxu0 0.0
    %1294 = vmatprep.subr.mxu0 0.0
    %1295 = vmatpush1.msra.mxu0 0.0
    %1296 = vmatprep.subr.mxu0 0.0
    %1297 = vmatpush1.msra.mxu0 0.0
    %1298 = vmatprep.subr.mxu0 0.0
    %1299 = vmatpush1.msra.mxu0 0.0
    %1300 = vmatprep.subr.mxu0 0.0
    %1301 = vmatpush1.msra.mxu0 0.0
    %1302 = vmatprep.subr.mxu0 0.0
    %1303 = vmatpush1.msra.mxu0 0.0
    %1304 = vmatprep.subr.mxu0 0.0
    %1305 = vmatpush1.msra.mxu0 0.0
    %1306 = vmatprep.subr.mxu0 0.0
    %1307 = vmatpush1.msra.mxu0 0.0
    %1308 = vmatprep.subr.mxu0 0.0
    %1309 = vmatpush1.msra.mxu0 0.0
    %1310 = vmatprep.subr.mxu0 0.0
    %1311 = vmatpush1.msra.mxu0 0.0
    %1312 = vmatprep.subr.mxu0 0.0
    %1313 = vmatpush1.msra.mxu0 0.0
    %1314 = vmatprep.subr.mxu0 0.0
    %1315 = vmatpush1.msra.mxu0 0.0
    %1316 = vmatprep.subr.mxu0 0.0
    %1317 = vmatpush1.msra.mxu0 0.0
    %1318 = vmatprep.mubr.f32.mxu0 0.0
    %1319 = vmatmul.mubr.f32.gmra.mrb[0].mxu0 %v755
    %v1320 = vpop.f32.mrb[0].mxu0
    %v1321 = vadd.f32 %v733, %v1320
    %v1322 = vpop.f32.mrb[0].mxu0
    %v1323 = vadd.f32 %v737, %v1322
    %1324 = vdwg.mxu0
    %v1325 = vmax.f32 %v824, 0.0
    %v1326 = vmax.f32 %v826, 0.0
    %v1327 = vmax.f32 %v895, 0.0
    %v1328 = vmax.f32 %v897, 0.0
    %v1329 = vmax.f32 %v966, 0.0
    %v1330 = vmax.f32 %v968, 0.0
    %v1331 = vmax.f32 %v1037, 0.0
    %v1332 = vmax.f32 %v1039, 0.0
    %v1333 = vmax.f32 %v1108, 0.0
    %v1334 = vmax.f32 %v1110, 0.0
    %v1335 = vmax.f32 %v1179, 0.0
    %v1336 = vmax.f32 %v1181, 0.0
    %v1337 = vmax.f32 %v1250, 0.0
    %v1338 = vmax.f32 %v1252, 0.0
    %v1339 = vmax.f32 %v1321, 0.0
    %v1340 = vmax.f32 %v1323, 0.0
    %v1341 = vld [vmem:[%s5] sm:$0xff]
    %v1342 = vld [vmem:[%s5 + $0x8] sm:$0xff]
    %v1343 = vld [vmem:[%s5 + $0x10] sm:$0xff]
    %v1344 = vld [vmem:[%s5 + $0x18] sm:$0xff]
    %v1345 = vld [vmem:[%s5 + $0x20] sm:$0xff]
    %v1346 = vld [vmem:[%s5 + $0x28] sm:$0xff]
    %v1347 = vld [vmem:[%s5 + $0x30] sm:$0xff]
    %v1348 = vld [vmem:[%s5 + $0x38] sm:$0xff]
    %v1349 = vld [vmem:[%s5 + $0x40] sm:$0xff]
    %v1350 = vld [vmem:[%s5 + $0x48] sm:$0xff]
    %v1351 = vld [vmem:[%s5 + $0x50] sm:$0xff]
    %v1352 = vld [vmem:[%s5 + $0x58] sm:$0xff]
    %v1353 = vld [vmem:[%s5 + $0x60] sm:$0xff]
    %v1354 = vld [vmem:[%s5 + $0x68] sm:$0xff]
    %v1355 = vld [vmem:[%s5 + $0x70] sm:$0xff]
    %v1356 = vld [vmem:[%s5 + $0x78] sm:$0xff]
    %v1357 = vld [vmem:[%s5 + $0x80] sm:$0xff]
    %v1358 = vld [vmem:[%s5 + $0x88] sm:$0xff]
    %v1359 = vld [vmem:[%s5 + $0x90] sm:$0xff]
    %v1360 = vld [vmem:[%s5 + $0x98] sm:$0xff]
    %v1361 = vld [vmem:[%s5 + $0xa0] sm:$0xff]
    %v1362 = vld [vmem:[%s5 + $0xa8] sm:$0xff]
    %v1363 = vld [vmem:[%s5 + $0xb0] sm:$0xff]
    %v1364 = vld [vmem:[%s5 + $0xb8] sm:$0xff]
    %v1365 = vld [vmem:[%s5 + $0xc0] sm:$0xff]
    %v1366 = vld [vmem:[%s5 + $0xc8] sm:$0xff]
    %v1367 = vld [vmem:[%s5 + $0xd0] sm:$0xff]
    %v1368 = vld [vmem:[%s5 + $0xd8] sm:$0xff]
    %v1369 = vld [vmem:[%s5 + $0xe0] sm:$0xff]
    %v1370 = vld [vmem:[%s5 + $0xe8] sm:$0xff]
    %v1371 = vld [vmem:[%s5 + $0xf0] sm:$0xff]
    %v1372 = vld [vmem:[%s5 + $0xf8] sm:$0xff]
    %v1373 = vld [vmem:[%s5 + $0x100] sm:$0xff]
    %v1374 = vld [vmem:[%s5 + $0x108] sm:$0xff]
    %v1375 = vld [vmem:[%s5 + $0x110] sm:$0xff]
    %v1376 = vld [vmem:[%s5 + $0x118] sm:$0xff]
    %v1377 = vld [vmem:[%s5 + $0x120] sm:$0xff]
    %v1378 = vld [vmem:[%s5 + $0x128] sm:$0xff]
    %v1379 = vld [vmem:[%s5 + $0x130] sm:$0xff]
    %v1380 = vld [vmem:[%s5 + $0x138] sm:$0xff]
    %v1381 = vld [vmem:[%s5 + $0x140] sm:$0xff]
    %v1382 = vld [vmem:[%s5 + $0x148] sm:$0xff]
    %v1383 = vld [vmem:[%s5 + $0x150] sm:$0xff]
    %v1384 = vld [vmem:[%s5 + $0x158] sm:$0xff]
    %v1385 = vld [vmem:[%s5 + $0x160] sm:$0xff]
    %v1386 = vld [vmem:[%s5 + $0x168] sm:$0xff]
    %v1387 = vld [vmem:[%s5 + $0x170] sm:$0xff]
    %v1388 = vld [vmem:[%s5 + $0x178] sm:$0xff]
    %v1389 = vld [vmem:[%s5 + $0x180] sm:$0xff]
    %v1390 = vld [vmem:[%s5 + $0x188] sm:$0xff]
    %v1391 = vld [vmem:[%s5 + $0x190] sm:$0xff]
    %v1392 = vld [vmem:[%s5 + $0x198] sm:$0xff]
    %v1393 = vld [vmem:[%s5 + $0x1a0] sm:$0xff]
    %v1394 = vld [vmem:[%s5 + $0x1a8] sm:$0xff]
    %v1395 = vld [vmem:[%s5 + $0x1b0] sm:$0xff]
    %v1396 = vld [vmem:[%s5 + $0x1b8] sm:$0xff]
    %v1397 = vld [vmem:[%s5 + $0x1c0] sm:$0xff]
    %v1398 = vld [vmem:[%s5 + $0x1c8] sm:$0xff]
    %v1399 = vld [vmem:[%s5 + $0x1d0] sm:$0xff]
    %v1400 = vld [vmem:[%s5 + $0x1d8] sm:$0xff]
    %v1401 = vld [vmem:[%s5 + $0x1e0] sm:$0xff]
    %v1402 = vld [vmem:[%s5 + $0x1e8] sm:$0xff]
    %v1403 = vld [vmem:[%s5 + $0x1f0] sm:$0xff]
    %v1404 = vld [vmem:[%s5 + $0x1f8] sm:$0xff]
    %v1405 = vld [vmem:[%s5 + $0x200] sm:$0xff]
    %v1406 = vld [vmem:[%s5 + $0x208] sm:$0xff]
    %v1407 = vld [vmem:[%s5 + $0x210] sm:$0xff]
    %v1408 = vld [vmem:[%s5 + $0x218] sm:$0xff]
    %v1409 = vld [vmem:[%s5 + $0x220] sm:$0xff]
    %v1410 = vld [vmem:[%s5 + $0x228] sm:$0xff]
    %v1411 = vld [vmem:[%s5 + $0x230] sm:$0xff]
    %v1412 = vld [vmem:[%s5 + $0x238] sm:$0xff]
    %v1413 = vld [vmem:[%s5 + $0x240] sm:$0xff]
    %v1414 = vld [vmem:[%s5 + $0x248] sm:$0xff]
    %v1415 = vld [vmem:[%s5 + $0x250] sm:$0xff]
    %v1416 = vld [vmem:[%s5 + $0x258] sm:$0xff]
    %v1417 = vld [vmem:[%s5 + $0x260] sm:$0xff]
    %v1418 = vld [vmem:[%s5 + $0x268] sm:$0xff]
    %v1419 = vld [vmem:[%s5 + $0x270] sm:$0xff]
    %v1420 = vld [vmem:[%s5 + $0x278] sm:$0xff]
    %v1421 = vld [vmem:[%s5 + $0x280] sm:$0xff]
    %v1422 = vld [vmem:[%s5 + $0x288] sm:$0xff]
    %v1423 = vld [vmem:[%s5 + $0x290] sm:$0xff]
    %v1424 = vld [vmem:[%s5 + $0x298] sm:$0xff]
    %v1425 = vld [vmem:[%s5 + $0x2a0] sm:$0xff]
    %v1426 = vld [vmem:[%s5 + $0x2a8] sm:$0xff]
    %v1427 = vld [vmem:[%s5 + $0x2b0] sm:$0xff]
    %v1428 = vld [vmem:[%s5 + $0x2b8] sm:$0xff]
    %v1429 = vld [vmem:[%s5 + $0x2c0] sm:$0xff]
    %v1430 = vld [vmem:[%s5 + $0x2c8] sm:$0xff]
    %v1431 = vld [vmem:[%s5 + $0x2d0] sm:$0xff]
    %v1432 = vld [vmem:[%s5 + $0x2d8] sm:$0xff]
    %v1433 = vld [vmem:[%s5 + $0x2e0] sm:$0xff]
    %v1434 = vld [vmem:[%s5 + $0x2e8] sm:$0xff]
    %v1435 = vld [vmem:[%s5 + $0x2f0] sm:$0xff]
    %v1436 = vld [vmem:[%s5 + $0x2f8] sm:$0xff]
    %v1437 = vld [vmem:[%s5 + $0x300] sm:$0xff]
    %v1438 = vld [vmem:[%s5 + $0x308] sm:$0xff]
    %v1439 = vld [vmem:[%s5 + $0x310] sm:$0xff]
    %v1440 = vld [vmem:[%s5 + $0x318] sm:$0xff]
    %v1441 = vld [vmem:[%s5 + $0x320] sm:$0xff]
    %v1442 = vld [vmem:[%s5 + $0x328] sm:$0xff]
    %v1443 = vld [vmem:[%s5 + $0x330] sm:$0xff]
    %v1444 = vld [vmem:[%s5 + $0x338] sm:$0xff]
    %v1445 = vld [vmem:[%s5 + $0x340] sm:$0xff]
    %v1446 = vld [vmem:[%s5 + $0x348] sm:$0xff]
    %v1447 = vld [vmem:[%s5 + $0x350] sm:$0xff]
    %v1448 = vld [vmem:[%s5 + $0x358] sm:$0xff]
    %v1449 = vld [vmem:[%s5 + $0x360] sm:$0xff]
    %v1450 = vld [vmem:[%s5 + $0x368] sm:$0xff]
    %v1451 = vld [vmem:[%s5 + $0x370] sm:$0xff]
    %v1452 = vld [vmem:[%s5 + $0x378] sm:$0xff]
    %v1453 = vld [vmem:[%s5 + $0x380] sm:$0xff]
    %v1454 = vld [vmem:[%s5 + $0x388] sm:$0xff]
    %v1455 = vld [vmem:[%s5 + $0x390] sm:$0xff]
    %v1456 = vld [vmem:[%s5 + $0x398] sm:$0xff]
    %v1457 = vld [vmem:[%s5 + $0x3a0] sm:$0xff]
    %v1458 = vld [vmem:[%s5 + $0x3a8] sm:$0xff]
    %v1459 = vld [vmem:[%s5 + $0x3b0] sm:$0xff]
    %v1460 = vld [vmem:[%s5 + $0x3b8] sm:$0xff]
    %v1461 = vld [vmem:[%s5 + $0x3c0] sm:$0xff]
    %v1462 = vld [vmem:[%s5 + $0x3c8] sm:$0xff]
    %v1463 = vld [vmem:[%s5 + $0x3d0] sm:$0xff]
    %v1464 = vld [vmem:[%s5 + $0x3d8] sm:$0xff]
    %v1465 = vld [vmem:[%s5 + $0x3e0] sm:$0xff]
    %v1466 = vld [vmem:[%s5 + $0x3e8] sm:$0xff]
    %v1467 = vld [vmem:[%s5 + $0x3f0] sm:$0xff]
    %v1468 = vld [vmem:[%s5 + $0x3f8] sm:$0xff]
    %v1469 = vld [vmem:[%s5 + $0x400] sm:$0xff]
    %v1470 = vld [vmem:[%s5 + $0x408] sm:$0xff]
    %v1471 = vld [vmem:[%s5 + $0x410] sm:$0xff]
    %v1472 = vld [vmem:[%s5 + $0x418] sm:$0xff]
    %v1473 = vld [vmem:[%s5 + $0x420] sm:$0xff]
    %v1474 = vld [vmem:[%s5 + $0x428] sm:$0xff]
    %v1475 = vld [vmem:[%s5 + $0x430] sm:$0xff]
    %v1476 = vld [vmem:[%s5 + $0x438] sm:$0xff]
    %v1477 = vld [vmem:[%s5 + $0x440] sm:$0xff]
    %v1478 = vld [vmem:[%s5 + $0x448] sm:$0xff]
    %v1479 = vld [vmem:[%s5 + $0x450] sm:$0xff]
    %v1480 = vld [vmem:[%s5 + $0x458] sm:$0xff]
    %v1481 = vld [vmem:[%s5 + $0x460] sm:$0xff]
    %v1482 = vld [vmem:[%s5 + $0x468] sm:$0xff]
    %v1483 = vld [vmem:[%s5 + $0x470] sm:$0xff]
    %v1484 = vld [vmem:[%s5 + $0x478] sm:$0xff]
    %v1485 = vld [vmem:[%s5 + $0x480] sm:$0xff]
    %v1486 = vld [vmem:[%s5 + $0x488] sm:$0xff]
    %v1487 = vld [vmem:[%s5 + $0x490] sm:$0xff]
    %v1488 = vld [vmem:[%s5 + $0x498] sm:$0xff]
    %v1489 = vld [vmem:[%s5 + $0x4a0] sm:$0xff]
    %v1490 = vld [vmem:[%s5 + $0x4a8] sm:$0xff]
    %v1491 = vld [vmem:[%s5 + $0x4b0] sm:$0xff]
    %v1492 = vld [vmem:[%s5 + $0x4b8] sm:$0xff]
    %v1493 = vld [vmem:[%s5 + $0x4c0] sm:$0xff]
    %v1494 = vld [vmem:[%s5 + $0x4c8] sm:$0xff]
    %v1495 = vld [vmem:[%s5 + $0x4d0] sm:$0xff]
    %v1496 = vld [vmem:[%s5 + $0x4d8] sm:$0xff]
    %v1497 = vld [vmem:[%s5 + $0x4e0] sm:$0xff]
    %v1498 = vld [vmem:[%s5 + $0x4e8] sm:$0xff]
    %v1499 = vld [vmem:[%s5 + $0x4f0] sm:$0xff]
    %v1500 = vld [vmem:[%s5 + $0x4f8] sm:$0xff]
    %v1501 = vld [vmem:[%s5 + $0x500] sm:$0xff]
    %v1502 = vld [vmem:[%s5 + $0x508] sm:$0xff]
    %v1503 = vld [vmem:[%s5 + $0x510] sm:$0xff]
    %v1504 = vld [vmem:[%s5 + $0x518] sm:$0xff]
    %v1505 = vld [vmem:[%s5 + $0x520] sm:$0xff]
    %v1506 = vld [vmem:[%s5 + $0x528] sm:$0xff]
    %v1507 = vld [vmem:[%s5 + $0x530] sm:$0xff]
    %v1508 = vld [vmem:[%s5 + $0x538] sm:$0xff]
    %v1509 = vld [vmem:[%s5 + $0x540] sm:$0xff]
    %v1510 = vld [vmem:[%s5 + $0x548] sm:$0xff]
    %v1511 = vld [vmem:[%s5 + $0x550] sm:$0xff]
    %v1512 = vld [vmem:[%s5 + $0x558] sm:$0xff]
    %v1513 = vld [vmem:[%s5 + $0x560] sm:$0xff]
    %v1514 = vld [vmem:[%s5 + $0x568] sm:$0xff]
    %v1515 = vld [vmem:[%s5 + $0x570] sm:$0xff]
    %v1516 = vld [vmem:[%s5 + $0x578] sm:$0xff]
    %v1517 = vld [vmem:[%s5 + $0x580] sm:$0xff]
    %v1518 = vld [vmem:[%s5 + $0x588] sm:$0xff]
    %v1519 = vld [vmem:[%s5 + $0x590] sm:$0xff]
    %v1520 = vld [vmem:[%s5 + $0x598] sm:$0xff]
    %v1521 = vld [vmem:[%s5 + $0x5a0] sm:$0xff]
    %v1522 = vld [vmem:[%s5 + $0x5a8] sm:$0xff]
    %v1523 = vld [vmem:[%s5 + $0x5b0] sm:$0xff]
    %v1524 = vld [vmem:[%s5 + $0x5b8] sm:$0xff]
    %v1525 = vld [vmem:[%s5 + $0x5c0] sm:$0xff]
    %v1526 = vld [vmem:[%s5 + $0x5c8] sm:$0xff]
    %v1527 = vld [vmem:[%s5 + $0x5d0] sm:$0xff]
    %v1528 = vld [vmem:[%s5 + $0x5d8] sm:$0xff]
    %v1529 = vld [vmem:[%s5 + $0x5e0] sm:$0xff]
    %v1530 = vld [vmem:[%s5 + $0x5e8] sm:$0xff]
    %v1531 = vld [vmem:[%s5 + $0x5f0] sm:$0xff]
    %v1532 = vld [vmem:[%s5 + $0x5f8] sm:$0xff]
    %v1533 = vld [vmem:[%s5 + $0x600] sm:$0xff]
    %v1534 = vld [vmem:[%s5 + $0x608] sm:$0xff]
    %v1535 = vld [vmem:[%s5 + $0x610] sm:$0xff]
    %v1536 = vld [vmem:[%s5 + $0x618] sm:$0xff]
    %v1537 = vld [vmem:[%s5 + $0x620] sm:$0xff]
    %v1538 = vld [vmem:[%s5 + $0x628] sm:$0xff]
    %v1539 = vld [vmem:[%s5 + $0x630] sm:$0xff]
    %v1540 = vld [vmem:[%s5 + $0x638] sm:$0xff]
    %v1541 = vld [vmem:[%s5 + $0x640] sm:$0xff]
    %v1542 = vld [vmem:[%s5 + $0x648] sm:$0xff]
    %v1543 = vld [vmem:[%s5 + $0x650] sm:$0xff]
    %v1544 = vld [vmem:[%s5 + $0x658] sm:$0xff]
    %v1545 = vld [vmem:[%s5 + $0x660] sm:$0xff]
    %v1546 = vld [vmem:[%s5 + $0x668] sm:$0xff]
    %v1547 = vld [vmem:[%s5 + $0x670] sm:$0xff]
    %v1548 = vld [vmem:[%s5 + $0x678] sm:$0xff]
    %v1549 = vld [vmem:[%s5 + $0x680] sm:$0xff]
    %v1550 = vld [vmem:[%s5 + $0x688] sm:$0xff]
    %v1551 = vld [vmem:[%s5 + $0x690] sm:$0xff]
    %v1552 = vld [vmem:[%s5 + $0x698] sm:$0xff]
    %v1553 = vld [vmem:[%s5 + $0x6a0] sm:$0xff]
    %v1554 = vld [vmem:[%s5 + $0x6a8] sm:$0xff]
    %v1555 = vld [vmem:[%s5 + $0x6b0] sm:$0xff]
    %v1556 = vld [vmem:[%s5 + $0x6b8] sm:$0xff]
    %v1557 = vld [vmem:[%s5 + $0x6c0] sm:$0xff]
    %v1558 = vld [vmem:[%s5 + $0x6c8] sm:$0xff]
    %v1559 = vld [vmem:[%s5 + $0x6d0] sm:$0xff]
    %v1560 = vld [vmem:[%s5 + $0x6d8] sm:$0xff]
    %v1561 = vld [vmem:[%s5 + $0x6e0] sm:$0xff]
    %v1562 = vld [vmem:[%s5 + $0x6e8] sm:$0xff]
    %v1563 = vld [vmem:[%s5 + $0x6f0] sm:$0xff]
    %v1564 = vld [vmem:[%s5 + $0x6f8] sm:$0xff]
    %v1565 = vld [vmem:[%s5 + $0x700] sm:$0xff]
    %v1566 = vld [vmem:[%s5 + $0x708] sm:$0xff]
    %v1567 = vld [vmem:[%s5 + $0x710] sm:$0xff]
    %v1568 = vld [vmem:[%s5 + $0x718] sm:$0xff]
    %v1569 = vld [vmem:[%s5 + $0x720] sm:$0xff]
    %v1570 = vld [vmem:[%s5 + $0x728] sm:$0xff]
    %v1571 = vld [vmem:[%s5 + $0x730] sm:$0xff]
    %v1572 = vld [vmem:[%s5 + $0x738] sm:$0xff]
    %v1573 = vld [vmem:[%s5 + $0x740] sm:$0xff]
    %v1574 = vld [vmem:[%s5 + $0x748] sm:$0xff]
    %v1575 = vld [vmem:[%s5 + $0x750] sm:$0xff]
    %v1576 = vld [vmem:[%s5 + $0x758] sm:$0xff]
    %v1577 = vld [vmem:[%s5 + $0x760] sm:$0xff]
    %v1578 = vld [vmem:[%s5 + $0x768] sm:$0xff]
    %v1579 = vld [vmem:[%s5 + $0x770] sm:$0xff]
    %v1580 = vld [vmem:[%s5 + $0x778] sm:$0xff]
    %v1581 = vld [vmem:[%s5 + $0x780] sm:$0xff]
    %v1582 = vld [vmem:[%s5 + $0x788] sm:$0xff]
    %v1583 = vld [vmem:[%s5 + $0x790] sm:$0xff]
    %v1584 = vld [vmem:[%s5 + $0x798] sm:$0xff]
    %v1585 = vld [vmem:[%s5 + $0x7a0] sm:$0xff]
    %v1586 = vld [vmem:[%s5 + $0x7a8] sm:$0xff]
    %v1587 = vld [vmem:[%s5 + $0x7b0] sm:$0xff]
    %v1588 = vld [vmem:[%s5 + $0x7b8] sm:$0xff]
    %v1589 = vld [vmem:[%s5 + $0x7c0] sm:$0xff]
    %v1590 = vld [vmem:[%s5 + $0x7c8] sm:$0xff]
    %v1591 = vld [vmem:[%s5 + $0x7d0] sm:$0xff]
    %v1592 = vld [vmem:[%s5 + $0x7d8] sm:$0xff]
    %v1593 = vld [vmem:[%s5 + $0x7e0] sm:$0xff]
    %v1594 = vld [vmem:[%s5 + $0x7e8] sm:$0xff]
    %v1595 = vld [vmem:[%s5 + $0x7f0] sm:$0xff]
    %v1596 = vld [vmem:[%s5 + $0x7f8] sm:$0xff]
    %v1597 = vld [vmem:[%s6] sm:$0x1]
    %v1599 = vlaneseq
    %v1600 = vshrl.u32 %v1599, 7
    %v1601 = vsub.s32 0, %v1600
    %v1602 = vrot.slane %v1597, %v1601
    %1604 = vmatprep.subr.mxu0 0.0
    %1605 = vmatpush1.msra.mxu0 %v1341
    %1606 = vmatprep.subr.mxu0 0.0
    %1607 = vmatpush1.msra.mxu0 %v1342
    %1608 = vmatprep.subr.mxu0 0.0
    %1609 = vmatpush1.msra.mxu0 %v1343
    %1610 = vmatprep.subr.mxu0 0.0
    %1611 = vmatpush1.msra.mxu0 %v1344
    %1612 = vmatprep.subr.mxu0 0.0
    %1613 = vmatpush1.msra.mxu0 %v1345
    %1614 = vmatprep.subr.mxu0 0.0
    %1615 = vmatpush1.msra.mxu0 %v1346
    %1616 = vmatprep.subr.mxu0 0.0
    %1617 = vmatpush1.msra.mxu0 %v1347
    %1618 = vmatprep.subr.mxu0 0.0
    %1619 = vmatpush1.msra.mxu0 %v1348
    %1620 = vmatprep.subr.mxu0 0.0
    %1621 = vmatpush1.msra.mxu0 %v1349
    %1622 = vmatprep.subr.mxu0 0.0
    %1623 = vmatpush1.msra.mxu0 %v1350
    %1624 = vmatprep.subr.mxu0 0.0
    %1625 = vmatpush1.msra.mxu0 %v1351
    %1626 = vmatprep.subr.mxu0 0.0
    %1627 = vmatpush1.msra.mxu0 %v1352
    %1628 = vmatprep.subr.mxu0 0.0
    %1629 = vmatpush1.msra.mxu0 %v1353
    %1630 = vmatprep.subr.mxu0 0.0
    %1631 = vmatpush1.msra.mxu0 %v1354
    %1632 = vmatprep.subr.mxu0 0.0
    %1633 = vmatpush1.msra.mxu0 %v1355
    %1634 = vmatprep.subr.mxu0 0.0
    %1635 = vmatpush1.msra.mxu0 %v1356
    %1636 = vmatprep.subr.mxu0 0.0
    %1637 = vmatpush1.msra.mxu0 %v1357
    %1638 = vmatprep.subr.mxu0 0.0
    %1639 = vmatpush1.msra.mxu0 %v1358
    %1640 = vmatprep.subr.mxu0 0.0
    %1641 = vmatpush1.msra.mxu0 %v1359
    %1642 = vmatprep.subr.mxu0 0.0
    %1643 = vmatpush1.msra.mxu0 %v1360
    %1644 = vmatprep.subr.mxu0 0.0
    %1645 = vmatpush1.msra.mxu0 %v1361
    %1646 = vmatprep.subr.mxu0 0.0
    %1647 = vmatpush1.msra.mxu0 %v1362
    %1648 = vmatprep.subr.mxu0 0.0
    %1649 = vmatpush1.msra.mxu0 %v1363
    %1650 = vmatprep.subr.mxu0 0.0
    %1651 = vmatpush1.msra.mxu0 %v1364
    %1652 = vmatprep.subr.mxu0 0.0
    %1653 = vmatpush1.msra.mxu0 %v1365
    %1654 = vmatprep.subr.mxu0 0.0
    %1655 = vmatpush1.msra.mxu0 %v1366
    %1656 = vmatprep.subr.mxu0 0.0
    %1657 = vmatpush1.msra.mxu0 %v1367
    %1658 = vmatprep.subr.mxu0 0.0
    %1659 = vmatpush1.msra.mxu0 %v1368
    %1660 = vmatprep.subr.mxu0 0.0
    %1661 = vmatpush1.msra.mxu0 %v1369
    %1662 = vmatprep.subr.mxu0 0.0
    %1663 = vmatpush1.msra.mxu0 %v1370
    %1664 = vmatprep.subr.mxu0 0.0
    %1665 = vmatpush1.msra.mxu0 %v1371
    %1666 = vmatprep.subr.mxu0 0.0
    %1667 = vmatpush1.msra.mxu0 %v1372
    %1668 = vmatprep.mubr.f32.mxu0 %v1326
    %1669 = vmatmul.mubr.f32.gmra.mrb[0].mxu0 %v1325
    %v1670 = vpop.f32.mrb[0].mxu0
    %v1671 = vadd.f32 %v1602, %v1670
    %v1672 = vpop.f32.mrb[0].mxu0
    %1673 = vdwg.mxu0
    %1674 = vmatprep.subr.mxu0 0.0
    %1675 = vmatpush1.msra.mxu0 %v1373
    %1676 = vmatprep.subr.mxu0 0.0
    %1677 = vmatpush1.msra.mxu0 %v1374
    %1678 = vmatprep.subr.mxu0 0.0
    %1679 = vmatpush1.msra.mxu0 %v1375
    %1680 = vmatprep.subr.mxu0 0.0
    %1681 = vmatpush1.msra.mxu0 %v1376
    %1682 = vmatprep.subr.mxu0 0.0
    %1683 = vmatpush1.msra.mxu0 %v1377
    %1684 = vmatprep.subr.mxu0 0.0
    %1685 = vmatpush1.msra.mxu0 %v1378
    %1686 = vmatprep.subr.mxu0 0.0
    %1687 = vmatpush1.msra.mxu0 %v1379
    %1688 = vmatprep.subr.mxu0 0.0
    %1689 = vmatpush1.msra.mxu0 %v1380
    %1690 = vmatprep.subr.mxu0 0.0
    %1691 = vmatpush1.msra.mxu0 %v1381
    %1692 = vmatprep.subr.mxu0 0.0
    %1693 = vmatpush1.msra.mxu0 %v1382
    %1694 = vmatprep.subr.mxu0 0.0
    %1695 = vmatpush1.msra.mxu0 %v1383
    %1696 = vmatprep.subr.mxu0 0.0
    %1697 = vmatpush1.msra.mxu0 %v1384
    %1698 = vmatprep.subr.mxu0 0.0
    %1699 = vmatpush1.msra.mxu0 %v1385
    %1700 = vmatprep.subr.mxu0 0.0
    %1701 = vmatpush1.msra.mxu0 %v1386
    %1702 = vmatprep.subr.mxu0 0.0
    %1703 = vmatpush1.msra.mxu0 %v1387
    %1704 = vmatprep.subr.mxu0 0.0
    %1705 = vmatpush1.msra.mxu0 %v1388
    %1706 = vmatprep.subr.mxu0 0.0
    %1707 = vmatpush1.msra.mxu0 %v1389
    %1708 = vmatprep.subr.mxu0 0.0
    %1709 = vmatpush1.msra.mxu0 %v1390
    %1710 = vmatprep.subr.mxu0 0.0
    %1711 = vmatpush1.msra.mxu0 %v1391
    %1712 = vmatprep.subr.mxu0 0.0
    %1713 = vmatpush1.msra.mxu0 %v1392
    %1714 = vmatprep.subr.mxu0 0.0
    %1715 = vmatpush1.msra.mxu0 %v1393
    %1716 = vmatprep.subr.mxu0 0.0
    %1717 = vmatpush1.msra.mxu0 %v1394
    %1718 = vmatprep.subr.mxu0 0.0
    %1719 = vmatpush1.msra.mxu0 %v1395
    %1720 = vmatprep.subr.mxu0 0.0
    %1721 = vmatpush1.msra.mxu0 %v1396
    %1722 = vmatprep.subr.mxu0 0.0
    %1723 = vmatpush1.msra.mxu0 %v1397
    %1724 = vmatprep.subr.mxu0 0.0
    %1725 = vmatpush1.msra.mxu0 %v1398
    %1726 = vmatprep.subr.mxu0 0.0
    %1727 = vmatpush1.msra.mxu0 %v1399
    %1728 = vmatprep.subr.mxu0 0.0
    %1729 = vmatpush1.msra.mxu0 %v1400
    %1730 = vmatprep.subr.mxu0 0.0
    %1731 = vmatpush1.msra.mxu0 %v1401
    %1732 = vmatprep.subr.mxu0 0.0
    %1733 = vmatpush1.msra.mxu0 %v1402
    %1734 = vmatprep.subr.mxu0 0.0
    %1735 = vmatpush1.msra.mxu0 %v1403
    %1736 = vmatprep.subr.mxu0 0.0
    %1737 = vmatpush1.msra.mxu0 %v1404
    %1738 = vmatprep.mubr.f32.mxu0 %v1328
    %1739 = vmatmul.mubr.f32.gmra.mrb[0].mxu0 %v1327
    %v1740 = vpop.f32.mrb[0].mxu0
    %v1741 = vadd.f32 %v1671, %v1740
    %v1742 = vpop.f32.mrb[0].mxu0
    %1743 = vdwg.mxu0
    %1744 = vmatprep.subr.mxu0 0.0
    %1745 = vmatpush1.msra.mxu0 %v1405
    %1746 = vmatprep.subr.mxu0 0.0
    %1747 = vmatpush1.msra.mxu0 %v1406
    %1748 = vmatprep.subr.mxu0 0.0
    %1749 = vmatpush1.msra.mxu0 %v1407
    %1750 = vmatprep.subr.mxu0 0.0
    %1751 = vmatpush1.msra.mxu0 %v1408
    %1752 = vmatprep.subr.mxu0 0.0
    %1753 = vmatpush1.msra.mxu0 %v1409
    %1754 = vmatprep.subr.mxu0 0.0
    %1755 = vmatpush1.msra.mxu0 %v1410
    %1756 = vmatprep.subr.mxu0 0.0
    %1757 = vmatpush1.msra.mxu0 %v1411
    %1758 = vmatprep.subr.mxu0 0.0
    %1759 = vmatpush1.msra.mxu0 %v1412
    %1760 = vmatprep.subr.mxu0 0.0
    %1761 = vmatpush1.msra.mxu0 %v1413
    %1762 = vmatprep.subr.mxu0 0.0
    %1763 = vmatpush1.msra.mxu0 %v1414
    %1764 = vmatprep.subr.mxu0 0.0
    %1765 = vmatpush1.msra.mxu0 %v1415
    %1766 = vmatprep.subr.mxu0 0.0
    %1767 = vmatpush1.msra.mxu0 %v1416
    %1768 = vmatprep.subr.mxu0 0.0
    %1769 = vmatpush1.msra.mxu0 %v1417
    %1770 = vmatprep.subr.mxu0 0.0
    %1771 = vmatpush1.msra.mxu0 %v1418
    %1772 = vmatprep.subr.mxu0 0.0
    %1773 = vmatpush1.msra.mxu0 %v1419
    %1774 = vmatprep.subr.mxu0 0.0
    %1775 = vmatpush1.msra.mxu0 %v1420
    %1776 = vmatprep.subr.mxu0 0.0
    %1777 = vmatpush1.msra.mxu0 %v1421
    %1778 = vmatprep.subr.mxu0 0.0
    %1779 = vmatpush1.msra.mxu0 %v1422
    %1780 = vmatprep.subr.mxu0 0.0
    %1781 = vmatpush1.msra.mxu0 %v1423
    %1782 = vmatprep.subr.mxu0 0.0
    %1783 = vmatpush1.msra.mxu0 %v1424
    %1784 = vmatprep.subr.mxu0 0.0
    %1785 = vmatpush1.msra.mxu0 %v1425
    %1786 = vmatprep.subr.mxu0 0.0
    %1787 = vmatpush1.msra.mxu0 %v1426
    %1788 = vmatprep.subr.mxu0 0.0
    %1789 = vmatpush1.msra.mxu0 %v1427
    %1790 = vmatprep.subr.mxu0 0.0
    %1791 = vmatpush1.msra.mxu0 %v1428
    %1792 = vmatprep.subr.mxu0 0.0
    %1793 = vmatpush1.msra.mxu0 %v1429
    %1794 = vmatprep.subr.mxu0 0.0
    %1795 = vmatpush1.msra.mxu0 %v1430
    %1796 = vmatprep.subr.mxu0 0.0
    %1797 = vmatpush1.msra.mxu0 %v1431
    %1798 = vmatprep.subr.mxu0 0.0
    %1799 = vmatpush1.msra.mxu0 %v1432
    %1800 = vmatprep.subr.mxu0 0.0
    %1801 = vmatpush1.msra.mxu0 %v1433
    %1802 = vmatprep.subr.mxu0 0.0
    %1803 = vmatpush1.msra.mxu0 %v1434
    %1804 = vmatprep.subr.mxu0 0.0
    %1805 = vmatpush1.msra.mxu0 %v1435
    %1806 = vmatprep.subr.mxu0 0.0
    %1807 = vmatpush1.msra.mxu0 %v1436
    %1808 = vmatprep.mubr.f32.mxu0 %v1330
    %1809 = vmatmul.mubr.f32.gmra.mrb[0].mxu0 %v1329
    %v1810 = vpop.f32.mrb[0].mxu0
    %v1811 = vadd.f32 %v1741, %v1810
    %v1812 = vpop.f32.mrb[0].mxu0
    %1813 = vdwg.mxu0
    %1814 = vmatprep.subr.mxu0 0.0
    %1815 = vmatpush1.msra.mxu0 %v1437
    %1816 = vmatprep.subr.mxu0 0.0
    %1817 = vmatpush1.msra.mxu0 %v1438
    %1818 = vmatprep.subr.mxu0 0.0
    %1819 = vmatpush1.msra.mxu0 %v1439
    %1820 = vmatprep.subr.mxu0 0.0
    %1821 = vmatpush1.msra.mxu0 %v1440
    %1822 = vmatprep.subr.mxu0 0.0
    %1823 = vmatpush1.msra.mxu0 %v1441
    %1824 = vmatprep.subr.mxu0 0.0
    %1825 = vmatpush1.msra.mxu0 %v1442
    %1826 = vmatprep.subr.mxu0 0.0
    %1827 = vmatpush1.msra.mxu0 %v1443
    %1828 = vmatprep.subr.mxu0 0.0
    %1829 = vmatpush1.msra.mxu0 %v1444
    %1830 = vmatprep.subr.mxu0 0.0
    %1831 = vmatpush1.msra.mxu0 %v1445
    %1832 = vmatprep.subr.mxu0 0.0
    %1833 = vmatpush1.msra.mxu0 %v1446
    %1834 = vmatprep.subr.mxu0 0.0
    %1835 = vmatpush1.msra.mxu0 %v1447
    %1836 = vmatprep.subr.mxu0 0.0
    %1837 = vmatpush1.msra.mxu0 %v1448
    %1838 = vmatprep.subr.mxu0 0.0
    %1839 = vmatpush1.msra.mxu0 %v1449
    %1840 = vmatprep.subr.mxu0 0.0
    %1841 = vmatpush1.msra.mxu0 %v1450
    %1842 = vmatprep.subr.mxu0 0.0
    %1843 = vmatpush1.msra.mxu0 %v1451
    %1844 = vmatprep.subr.mxu0 0.0
    %1845 = vmatpush1.msra.mxu0 %v1452
    %1846 = vmatprep.subr.mxu0 0.0
    %1847 = vmatpush1.msra.mxu0 %v1453
    %1848 = vmatprep.subr.mxu0 0.0
    %1849 = vmatpush1.msra.mxu0 %v1454
    %1850 = vmatprep.subr.mxu0 0.0
    %1851 = vmatpush1.msra.mxu0 %v1455
    %1852 = vmatprep.subr.mxu0 0.0
    %1853 = vmatpush1.msra.mxu0 %v1456
    %1854 = vmatprep.subr.mxu0 0.0
    %1855 = vmatpush1.msra.mxu0 %v1457
    %1856 = vmatprep.subr.mxu0 0.0
    %1857 = vmatpush1.msra.mxu0 %v1458
    %1858 = vmatprep.subr.mxu0 0.0
    %1859 = vmatpush1.msra.mxu0 %v1459
    %1860 = vmatprep.subr.mxu0 0.0
    %1861 = vmatpush1.msra.mxu0 %v1460
    %1862 = vmatprep.subr.mxu0 0.0
    %1863 = vmatpush1.msra.mxu0 %v1461
    %1864 = vmatprep.subr.mxu0 0.0
    %1865 = vmatpush1.msra.mxu0 %v1462
    %1866 = vmatprep.subr.mxu0 0.0
    %1867 = vmatpush1.msra.mxu0 %v1463
    %1868 = vmatprep.subr.mxu0 0.0
    %1869 = vmatpush1.msra.mxu0 %v1464
    %1870 = vmatprep.subr.mxu0 0.0
    %1871 = vmatpush1.msra.mxu0 %v1465
    %1872 = vmatprep.subr.mxu0 0.0
    %1873 = vmatpush1.msra.mxu0 %v1466
    %1874 = vmatprep.subr.mxu0 0.0
    %1875 = vmatpush1.msra.mxu0 %v1467
    %1876 = vmatprep.subr.mxu0 0.0
    %1877 = vmatpush1.msra.mxu0 %v1468
    %1878 = vmatprep.mubr.f32.mxu0 %v1332
    %1879 = vmatmul.mubr.f32.gmra.mrb[0].mxu0 %v1331
    %v1880 = vpop.f32.mrb[0].mxu0
    %v1881 = vadd.f32 %v1811, %v1880
    %v1882 = vpop.f32.mrb[0].mxu0
    %1883 = vdwg.mxu0
    %1884 = vmatprep.subr.mxu0 0.0
    %1885 = vmatpush1.msra.mxu0 %v1469
    %1886 = vmatprep.subr.mxu0 0.0
    %1887 = vmatpush1.msra.mxu0 %v1470
    %1888 = vmatprep.subr.mxu0 0.0
    %1889 = vmatpush1.msra.mxu0 %v1471
    %1890 = vmatprep.subr.mxu0 0.0
    %1891 = vmatpush1.msra.mxu0 %v1472
    %1892 = vmatprep.subr.mxu0 0.0
    %1893 = vmatpush1.msra.mxu0 %v1473
    %1894 = vmatprep.subr.mxu0 0.0
    %1895 = vmatpush1.msra.mxu0 %v1474
    %1896 = vmatprep.subr.mxu0 0.0
    %1897 = vmatpush1.msra.mxu0 %v1475
    %1898 = vmatprep.subr.mxu0 0.0
    %1899 = vmatpush1.msra.mxu0 %v1476
    %1900 = vmatprep.subr.mxu0 0.0
    %1901 = vmatpush1.msra.mxu0 %v1477
    %1902 = vmatprep.subr.mxu0 0.0
    %1903 = vmatpush1.msra.mxu0 %v1478
    %1904 = vmatprep.subr.mxu0 0.0
    %1905 = vmatpush1.msra.mxu0 %v1479
    %1906 = vmatprep.subr.mxu0 0.0
    %1907 = vmatpush1.msra.mxu0 %v1480
    %1908 = vmatprep.subr.mxu0 0.0
    %1909 = vmatpush1.msra.mxu0 %v1481
    %1910 = vmatprep.subr.mxu0 0.0
    %1911 = vmatpush1.msra.mxu0 %v1482
    %1912 = vmatprep.subr.mxu0 0.0
    %1913 = vmatpush1.msra.mxu0 %v1483
    %1914 = vmatprep.subr.mxu0 0.0
    %1915 = vmatpush1.msra.mxu0 %v1484
    %1916 = vmatprep.subr.mxu0 0.0
    %1917 = vmatpush1.msra.mxu0 %v1485
    %1918 = vmatprep.subr.mxu0 0.0
    %1919 = vmatpush1.msra.mxu0 %v1486
    %1920 = vmatprep.subr.mxu0 0.0
    %1921 = vmatpush1.msra.mxu0 %v1487
    %1922 = vmatprep.subr.mxu0 0.0
    %1923 = vmatpush1.msra.mxu0 %v1488
    %1924 = vmatprep.subr.mxu0 0.0
    %1925 = vmatpush1.msra.mxu0 %v1489
    %1926 = vmatprep.subr.mxu0 0.0
    %1927 = vmatpush1.msra.mxu0 %v1490
    %1928 = vmatprep.subr.mxu0 0.0
    %1929 = vmatpush1.msra.mxu0 %v1491
    %1930 = vmatprep.subr.mxu0 0.0
    %1931 = vmatpush1.msra.mxu0 %v1492
    %1932 = vmatprep.subr.mxu0 0.0
    %1933 = vmatpush1.msra.mxu0 %v1493
    %1934 = vmatprep.subr.mxu0 0.0
    %1935 = vmatpush1.msra.mxu0 %v1494
    %1936 = vmatprep.subr.mxu0 0.0
    %1937 = vmatpush1.msra.mxu0 %v1495
    %1938 = vmatprep.subr.mxu0 0.0
    %1939 = vmatpush1.msra.mxu0 %v1496
    %1940 = vmatprep.subr.mxu0 0.0
    %1941 = vmatpush1.msra.mxu0 %v1497
    %1942 = vmatprep.subr.mxu0 0.0
    %1943 = vmatpush1.msra.mxu0 %v1498
    %1944 = vmatprep.subr.mxu0 0.0
    %1945 = vmatpush1.msra.mxu0 %v1499
    %1946 = vmatprep.subr.mxu0 0.0
    %1947 = vmatpush1.msra.mxu0 %v1500
    %1948 = vmatprep.mubr.f32.mxu0 %v1334
    %1949 = vmatmul.mubr.f32.gmra.mrb[0].mxu0 %v1333
    %v1950 = vpop.f32.mrb[0].mxu0
    %v1951 = vadd.f32 %v1881, %v1950
    %v1952 = vpop.f32.mrb[0].mxu0
    %1953 = vdwg.mxu0
    %1954 = vmatprep.subr.mxu0 0.0
    %1955 = vmatpush1.msra.mxu0 %v1501
    %1956 = vmatprep.subr.mxu0 0.0
    %1957 = vmatpush1.msra.mxu0 %v1502
    %1958 = vmatprep.subr.mxu0 0.0
    %1959 = vmatpush1.msra.mxu0 %v1503
    %1960 = vmatprep.subr.mxu0 0.0
    %1961 = vmatpush1.msra.mxu0 %v1504
    %1962 = vmatprep.subr.mxu0 0.0
    %1963 = vmatpush1.msra.mxu0 %v1505
    %1964 = vmatprep.subr.mxu0 0.0
    %1965 = vmatpush1.msra.mxu0 %v1506
    %1966 = vmatprep.subr.mxu0 0.0
    %1967 = vmatpush1.msra.mxu0 %v1507
    %1968 = vmatprep.subr.mxu0 0.0
    %1969 = vmatpush1.msra.mxu0 %v1508
    %1970 = vmatprep.subr.mxu0 0.0
    %1971 = vmatpush1.msra.mxu0 %v1509
    %1972 = vmatprep.subr.mxu0 0.0
    %1973 = vmatpush1.msra.mxu0 %v1510
    %1974 = vmatprep.subr.mxu0 0.0
    %1975 = vmatpush1.msra.mxu0 %v1511
    %1976 = vmatprep.subr.mxu0 0.0
    %1977 = vmatpush1.msra.mxu0 %v1512
    %1978 = vmatprep.subr.mxu0 0.0
    %1979 = vmatpush1.msra.mxu0 %v1513
    %1980 = vmatprep.subr.mxu0 0.0
    %1981 = vmatpush1.msra.mxu0 %v1514
    %1982 = vmatprep.subr.mxu0 0.0
    %1983 = vmatpush1.msra.mxu0 %v1515
    %1984 = vmatprep.subr.mxu0 0.0
    %1985 = vmatpush1.msra.mxu0 %v1516
    %1986 = vmatprep.subr.mxu0 0.0
    %1987 = vmatpush1.msra.mxu0 %v1517
    %1988 = vmatprep.subr.mxu0 0.0
    %1989 = vmatpush1.msra.mxu0 %v1518
    %1990 = vmatprep.subr.mxu0 0.0
    %1991 = vmatpush1.msra.mxu0 %v1519
    %1992 = vmatprep.subr.mxu0 0.0
    %1993 = vmatpush1.msra.mxu0 %v1520
    %1994 = vmatprep.subr.mxu0 0.0
    %1995 = vmatpush1.msra.mxu0 %v1521
    %1996 = vmatprep.subr.mxu0 0.0
    %1997 = vmatpush1.msra.mxu0 %v1522
    %1998 = vmatprep.subr.mxu0 0.0
    %1999 = vmatpush1.msra.mxu0 %v1523
    %2000 = vmatprep.subr.mxu0 0.0
    %2001 = vmatpush1.msra.mxu0 %v1524
    %2002 = vmatprep.subr.mxu0 0.0
    %2003 = vmatpush1.msra.mxu0 %v1525
    %2004 = vmatprep.subr.mxu0 0.0
    %2005 = vmatpush1.msra.mxu0 %v1526
    %2006 = vmatprep.subr.mxu0 0.0
    %2007 = vmatpush1.msra.mxu0 %v1527
    %2008 = vmatprep.subr.mxu0 0.0
    %2009 = vmatpush1.msra.mxu0 %v1528
    %2010 = vmatprep.subr.mxu0 0.0
    %2011 = vmatpush1.msra.mxu0 %v1529
    %2012 = vmatprep.subr.mxu0 0.0
    %2013 = vmatpush1.msra.mxu0 %v1530
    %2014 = vmatprep.subr.mxu0 0.0
    %2015 = vmatpush1.msra.mxu0 %v1531
    %2016 = vmatprep.subr.mxu0 0.0
    %2017 = vmatpush1.msra.mxu0 %v1532
    %2018 = vmatprep.mubr.f32.mxu0 %v1336
    %2019 = vmatmul.mubr.f32.gmra.mrb[0].mxu0 %v1335
    %v2020 = vpop.f32.mrb[0].mxu0
    %v2021 = vadd.f32 %v1951, %v2020
    %v2022 = vpop.f32.mrb[0].mxu0
    %2023 = vdwg.mxu0
    %2024 = vmatprep.subr.mxu0 0.0
    %2025 = vmatpush1.msra.mxu0 %v1533
    %2026 = vmatprep.subr.mxu0 0.0
    %2027 = vmatpush1.msra.mxu0 %v1534
    %2028 = vmatprep.subr.mxu0 0.0
    %2029 = vmatpush1.msra.mxu0 %v1535
    %2030 = vmatprep.subr.mxu0 0.0
    %2031 = vmatpush1.msra.mxu0 %v1536
    %2032 = vmatprep.subr.mxu0 0.0
    %2033 = vmatpush1.msra.mxu0 %v1537
    %2034 = vmatprep.subr.mxu0 0.0
    %2035 = vmatpush1.msra.mxu0 %v1538
    %2036 = vmatprep.subr.mxu0 0.0
    %2037 = vmatpush1.msra.mxu0 %v1539
    %2038 = vmatprep.subr.mxu0 0.0
    %2039 = vmatpush1.msra.mxu0 %v1540
    %2040 = vmatprep.subr.mxu0 0.0
    %2041 = vmatpush1.msra.mxu0 %v1541
    %2042 = vmatprep.subr.mxu0 0.0
    %2043 = vmatpush1.msra.mxu0 %v1542
    %2044 = vmatprep.subr.mxu0 0.0
    %2045 = vmatpush1.msra.mxu0 %v1543
    %2046 = vmatprep.subr.mxu0 0.0
    %2047 = vmatpush1.msra.mxu0 %v1544
    %2048 = vmatprep.subr.mxu0 0.0
    %2049 = vmatpush1.msra.mxu0 %v1545
    %2050 = vmatprep.subr.mxu0 0.0
    %2051 = vmatpush1.msra.mxu0 %v1546
    %2052 = vmatprep.subr.mxu0 0.0
    %2053 = vmatpush1.msra.mxu0 %v1547
    %2054 = vmatprep.subr.mxu0 0.0
    %2055 = vmatpush1.msra.mxu0 %v1548
    %2056 = vmatprep.subr.mxu0 0.0
    %2057 = vmatpush1.msra.mxu0 %v1549
    %2058 = vmatprep.subr.mxu0 0.0
    %2059 = vmatpush1.msra.mxu0 %v1550
    %2060 = vmatprep.subr.mxu0 0.0
    %2061 = vmatpush1.msra.mxu0 %v1551
    %2062 = vmatprep.subr.mxu0 0.0
    %2063 = vmatpush1.msra.mxu0 %v1552
    %2064 = vmatprep.subr.mxu0 0.0
    %2065 = vmatpush1.msra.mxu0 %v1553
    %2066 = vmatprep.subr.mxu0 0.0
    %2067 = vmatpush1.msra.mxu0 %v1554
    %2068 = vmatprep.subr.mxu0 0.0
    %2069 = vmatpush1.msra.mxu0 %v1555
    %2070 = vmatprep.subr.mxu0 0.0
    %2071 = vmatpush1.msra.mxu0 %v1556
    %2072 = vmatprep.subr.mxu0 0.0
    %2073 = vmatpush1.msra.mxu0 %v1557
    %2074 = vmatprep.subr.mxu0 0.0
    %2075 = vmatpush1.msra.mxu0 %v1558
    %2076 = vmatprep.subr.mxu0 0.0
    %2077 = vmatpush1.msra.mxu0 %v1559
    %2078 = vmatprep.subr.mxu0 0.0
    %2079 = vmatpush1.msra.mxu0 %v1560
    %2080 = vmatprep.subr.mxu0 0.0
    %2081 = vmatpush1.msra.mxu0 %v1561
    %2082 = vmatprep.subr.mxu0 0.0
    %2083 = vmatpush1.msra.mxu0 %v1562
    %2084 = vmatprep.subr.mxu0 0.0
    %2085 = vmatpush1.msra.mxu0 %v1563
    %2086 = vmatprep.subr.mxu0 0.0
    %2087 = vmatpush1.msra.mxu0 %v1564
    %2088 = vmatprep.mubr.f32.mxu0 %v1338
    %2089 = vmatmul.mubr.f32.gmra.mrb[0].mxu0 %v1337
    %v2090 = vpop.f32.mrb[0].mxu0
    %v2091 = vadd.f32 %v2021, %v2090
    %v2092 = vpop.f32.mrb[0].mxu0
    %2093 = vdwg.mxu0
    %2094 = vmatprep.subr.mxu0 0.0
    %2095 = vmatpush1.msra.mxu0 %v1565
    %2096 = vmatprep.subr.mxu0 0.0
    %2097 = vmatpush1.msra.mxu0 %v1566
    %2098 = vmatprep.subr.mxu0 0.0
    %2099 = vmatpush1.msra.mxu0 %v1567
    %2100 = vmatprep.subr.mxu0 0.0
    %2101 = vmatpush1.msra.mxu0 %v1568
    %2102 = vmatprep.subr.mxu0 0.0
    %2103 = vmatpush1.msra.mxu0 %v1569
    %2104 = vmatprep.subr.mxu0 0.0
    %2105 = vmatpush1.msra.mxu0 %v1570
    %2106 = vmatprep.subr.mxu0 0.0
    %2107 = vmatpush1.msra.mxu0 %v1571
    %2108 = vmatprep.subr.mxu0 0.0
    %2109 = vmatpush1.msra.mxu0 %v1572
    %2110 = vmatprep.subr.mxu0 0.0
    %2111 = vmatpush1.msra.mxu0 %v1573
    %2112 = vmatprep.subr.mxu0 0.0
    %2113 = vmatpush1.msra.mxu0 %v1574
    %2114 = vmatprep.subr.mxu0 0.0
    %2115 = vmatpush1.msra.mxu0 %v1575
    %2116 = vmatprep.subr.mxu0 0.0
    %2117 = vmatpush1.msra.mxu0 %v1576
    %2118 = vmatprep.subr.mxu0 0.0
    %2119 = vmatpush1.msra.mxu0 %v1577
    %2120 = vmatprep.subr.mxu0 0.0
    %2121 = vmatpush1.msra.mxu0 %v1578
    %2122 = vmatprep.subr.mxu0 0.0
    %2123 = vmatpush1.msra.mxu0 %v1579
    %2124 = vmatprep.subr.mxu0 0.0
    %2125 = vmatpush1.msra.mxu0 %v1580
    %2126 = vmatprep.subr.mxu0 0.0
    %2127 = vmatpush1.msra.mxu0 %v1581
    %2128 = vmatprep.subr.mxu0 0.0
    %2129 = vmatpush1.msra.mxu0 %v1582
    %2130 = vmatprep.subr.mxu0 0.0
    %2131 = vmatpush1.msra.mxu0 %v1583
    %2132 = vmatprep.subr.mxu0 0.0
    %2133 = vmatpush1.msra.mxu0 %v1584
    %2134 = vmatprep.subr.mxu0 0.0
    %2135 = vmatpush1.msra.mxu0 %v1585
    %2136 = vmatprep.subr.mxu0 0.0
    %2137 = vmatpush1.msra.mxu0 %v1586
    %2138 = vmatprep.subr.mxu0 0.0
    %2139 = vmatpush1.msra.mxu0 %v1587
    %2140 = vmatprep.subr.mxu0 0.0
    %2141 = vmatpush1.msra.mxu0 %v1588
    %2142 = vmatprep.subr.mxu0 0.0
    %2143 = vmatpush1.msra.mxu0 %v1589
    %2144 = vmatprep.subr.mxu0 0.0
    %2145 = vmatpush1.msra.mxu0 %v1590
    %2146 = vmatprep.subr.mxu0 0.0
    %2147 = vmatpush1.msra.mxu0 %v1591
    %2148 = vmatprep.subr.mxu0 0.0
    %2149 = vmatpush1.msra.mxu0 %v1592
    %2150 = vmatprep.subr.mxu0 0.0
    %2151 = vmatpush1.msra.mxu0 %v1593
    %2152 = vmatprep.subr.mxu0 0.0
    %2153 = vmatpush1.msra.mxu0 %v1594
    %2154 = vmatprep.subr.mxu0 0.0
    %2155 = vmatpush1.msra.mxu0 %v1595
    %2156 = vmatprep.subr.mxu0 0.0
    %2157 = vmatpush1.msra.mxu0 %v1596
    %2158 = vmatprep.mubr.f32.mxu0 %v1340
    %2159 = vmatmul.mubr.f32.gmra.mrb[0].mxu0 %v1339
    %v2160 = vpop.f32.mrb[0].mxu0
    %v2161 = vadd.f32 %v2091, %v2160
    %v2162 = vpop.f32.mrb[0].mxu0
    %2163 = vdwg.mxu0
    %vm2164 = vcmask 123904
    %2165 = vst.msk [vmem:[#allocation4] sm:$0x3] %vm2164, %v2161
    // Predicated region
    $region30: #{tpu_custom_call.1} parent=1 // pred_check
      _
    $region31: #{tpu_custom_call.1} parent=1 // pred_check_branch
      %2167 = sbr.rel (0) target = $region33
    $region32: #{tpu_custom_call.1} parent=1 // pred_region
      %s2169 = ssub.s32 32, 32
      %2170 = vsyncadd [#allocation3], %s2169
      %s2172 = sshll.u32 [#allocation2], 4
      %s2173 = int_to_ptr.vmem [resolvable:$true] %s2172
      %2175 = dma.vmem_to_hbm [thread:$0]  %s2173, 32, %s7, [#allocation3]
    $region33: #{tpu_custom_call.1} parent=1 // pred_fallthru
      _
    // Predicated region
    $region34: #{tpu_custom_call.1} parent=1 // pred_check
      _
    $region35: #{tpu_custom_call.1} parent=1 // pred_check_branch
      %2177 = sbr.rel (0) target = $region37
    $region36: #{tpu_custom_call.1} parent=1 // pred_region
      %s2179 = ssub.s32 32, 32
      %2180 = vsyncadd [#allocation5], %s2179
      %s2182 = sshll.u32 [#allocation4], 4
      %s2183 = int_to_ptr.vmem [resolvable:$true] %s2182
      %2185 = dma.vmem_to_hbm [thread:$0]  %s2183, 32, %s8, [#allocation5]
    $region37: #{tpu_custom_call.1} parent=1 // pred_fallthru
      _
    // Predicated region
    $region38: #{tpu_custom_call.1} parent=1 // pred_check
      _
    $region39: #{tpu_custom_call.1} parent=1 // pred_check_branch
      %2187 = sbr.rel (0) target = $region41
    $region40: #{tpu_custom_call.1} parent=1 // pred_region
      %2188 = dma.done [#allocation3], 32
    $region41: #{tpu_custom_call.1} parent=1 // pred_fallthru
      _
    // Predicated region
    $region42: #{tpu_custom_call.1} parent=1 // pred_check
      _
    $region43: #{tpu_custom_call.1} parent=1 // pred_check_branch
      %2190 = sbr.rel (0) target = $region45
    $region44: #{tpu_custom_call.1} parent=1 // pred_region
      %2191 = dma.done [#allocation5], 32
    $region45: #{tpu_custom_call.1} parent=1 // pred_fallthru
      _
    %2192 = vsyncpa [#allocation3], 1
    %2193 = vsyncpa [#allocation5], 1

</llo_original>
